<compile_context>
chip_gen: v5e
topology: v5e:2x2
jax: 0.10.0
libtpu: 0.0.40
codegen_flags: <defaults>
</compile_context>

<pallas_src>
import jax
import jax.numpy as jnp
import numpy as np
from jax.experimental import pallas as pl
from jax.experimental.pallas import tpu as pltpu


# f32 keeps the 1e-4 check tight; switch to jnp.bfloat16 on v6e/v7x at scale.
_MATMUL_IN_DTYPE = jnp.float32


# ------------------------------ fused kernel --------------------------------

def _disc_fused_kernel(p1_ref, w1_ref, gsel_ref, w2_ref, gamma_ref, beta_ref,
                       w3_ref, gsum_ref, o_ref):
    """Whole Discriminator forward on one tile.

    p1_ref    : (M1, K1)        block-1 im2col patches (rows = (n,oh,ow))
    w1_ref    : (K1, C1)        block-1 weight, rows ordered (kh,kw,cin)
    gsel_ref  : (16*M2, M1)     0/1 row-selection matrix for block-2 im2col
    w2_ref    : (16*C1, C2)     block-2 weight, rows ordered (kh,kw,cin)
    gamma_ref : (1, C2)         BatchNorm gamma
    beta_ref  : (1, C2)         BatchNorm beta
    w3_ref    : (M2, C2)        block-3 weight tiled per sample
    gsum_ref  : (R, M2)         0/1 per-sample row-sum matrix (R >= N, padded)
    o_ref     : (R, 128)        lane-dense output slab; result in [:, 0]
    """
    f32 = jnp.float32
    c1 = w1_ref.shape[1]
    c2 = w2_ref.shape[1]
    kk = w2_ref.shape[0] // c1            # = kernel_size**2 = 16
    m2 = gsel_ref.shape[0] // kk          # = N * H2 * W2

    def mm(a, b):
        return jnp.dot(a.astype(_MATMUL_IN_DTYPE), b.astype(_MATMUL_IN_DTYPE),
                       preferred_element_type=f32)

    # ---- block 1: conv (as patches @ W) -> LeakyReLU(0.2)
    y1 = mm(p1_ref[...], w1_ref[...])                      # (M1, C1)
    y1 = jnp.where(y1 > 0, y1, 0.2 * y1)

    # ---- block 2: conv via in-kernel gather-as-matmul
    # a[t*m2 + r, :] = y1 row feeding kernel offset t of output row r
    # (all-zero selection rows reproduce the zero padding exactly).
    a = mm(gsel_ref[...], y1)                              # (kk*m2, C1)
    y2 = mm(a[0:m2, :], w2_ref[0:c1, :])                   # accumulate 16 taps
    for t in range(1, kk):
        y2 = y2 + mm(a[t * m2:(t + 1) * m2, :],
                     w2_ref[t * c1:(t + 1) * c1, :])       # (M2, C2)

    # BatchNorm over all (n,h,w) rows (single tile -> exact batch stats),
    # biased variance, eps=1e-5, then LeakyReLU(0.2).
    mean = jnp.mean(y2, axis=0, keepdims=True)
    d = y2 - mean
    var = jnp.mean(d * d, axis=0, keepdims=True)
    z = d * jax.lax.rsqrt(var + 1e-5) * gamma_ref[...] + beta_ref[...]
    z = jnp.where(z > 0, z, 0.2 * z)                       # (M2, C2)

    # ---- block 3: 4x4 'valid' conv covering the whole 4x4 map -> 1x1, sigmoid
    e = z * w3_ref[...]                                    # (M2, C2)
    per_n = jnp.dot(gsum_ref[...], e, preferred_element_type=f32)   # (R, C2)
    y3 = jnp.sum(per_n, axis=1, keepdims=True)             # (R, 1)
    o_ref[...] = jnp.broadcast_to(jax.nn.sigmoid(y3), o_ref.shape)


# --------------------------------- glue -------------------------------------

def _im2col_static(x_nhwc, k, stride, pad):
    """Patches via k*k static strided slices (no gather). Columns (kh,kw,cin)."""
    N, H, W, C = x_nhwc.shape
    Ho = (H + 2 * pad - k) // stride + 1
    Wo = (W + 2 * pad - k) // stride + 1
    xp = jnp.pad(x_nhwc, ((0, 0), (pad, pad), (pad, pad), (0, 0)))
    slabs = []
    for kh in range(k):
        for kw in range(k):
            slabs.append(jax.lax.slice(
                xp,
                (0, kh, kw, 0),
                (N, kh + (Ho - 1) * stride + 1, kw + (Wo - 1) * stride + 1, C),
                (1, stride, stride, 1)))                   # (N, Ho, Wo, C)
    patches = jnp.concatenate(slabs, axis=-1)              # (N, Ho, Wo, k*k*C)
    return patches.reshape(N * Ho * Wo, k * k * C), (Ho, Wo)


def _w_matrix(w):
    """(Cout, Cin, kh, kw) -> (kh*kw*Cin, Cout), rows ordered (kh, kw, cin)."""
    cout, cin, kh, kw = w.shape
    return jnp.transpose(w, (2, 3, 1, 0)).reshape(kh * kw * cin, cout)


def _conv_selection_matrix(N, H, W, k, stride, pad):
    """0/1 matrix G of shape (k*k*N*Ho*Wo, N*H*W):
    (G @ Y)[t*M + r] = row of Y feeding kernel-offset t of output row r
    (zero row where the offset lands in the zero padding)."""
    Ho = (H + 2 * pad - k) // stride + 1
    Wo = (W + 2 * pad - k) // stride + 1
    M = N * Ho * Wo
    G = np.zeros((k * k, M, N * H * W), np.float32)
    for dh in range(k):
        for dw in range(k):
            t = dh * k + dw
            for n in range(N):
                for oh in range(Ho):
                    for ow in range(Wo):
                        ih = oh * stride + dh - pad
                        iw = ow * stride + dw - pad
                        if 0 <= ih < H and 0 <= iw < W:
                            G[t, n * Ho * Wo + oh * Wo + ow,
                              n * H * W + ih * W + iw] = 1.0
    return jnp.asarray(G.reshape(k * k * M, N * H * W)), (Ho, Wo)


def _group_sum_matrix(N, group, rows_padded):
    S = np.zeros((rows_padded, N * group), np.float32)
    for n in range(N):
        S[n, n * group:(n + 1) * group] = 1.0
    return jnp.asarray(S)


def _vmem_full_spec(a):
    nd = a.ndim
    # default-arg binding so the lambda cannot capture a loop variable late
    return pl.BlockSpec(a.shape, lambda i, _nd=nd: (0,) * _nd)


@jax.jit
def discriminator_forward(x, params):
    w1, w2, g2, b2, w3 = params
    N, _, H, W = x.shape
    c1 = w1.shape[0]
    c2 = w2.shape[0]

    # single tiny layout change of the input; everything after stays fused
    x_nhwc = jnp.transpose(x, (0, 2, 3, 1))

    # block-1 patches (static slices, no gather) + reordered weights
    p1, (h1, w1sp) = _im2col_static(x_nhwc, 4, 2, 1)       # (N*h1*w1, 48)
    w1m = _w_matrix(w1)                                    # (48, c1)

    # block-2 in-kernel gather matrix + reordered weights
    gsel, (h2, w2sp) = _conv_selection_matrix(N, h1, w1sp, 4, 2, 1)
    w2m = _w_matrix(w2)                                    # (16*c1, c2)

    # block-3: k4,s1,p0 on a 4x4 map -> full-window contraction
    assert h2 == 4 and w2sp == 4, "expects 16x16 input (4x4 map before block 3)"
    w3r = jnp.transpose(w3[0], (1, 2, 0)).reshape(h2 * w2sp, c2)  # (16, c2)
    w3t = jnp.tile(w3r, (N, 1))                            # (N*16, c2)

    m2 = N * h2 * w2sp
    rows = max(8, ((N + 7) // 8) * 8)                      # lane/sublane-dense out
    gsum = _group_sum_matrix(N, h2 * w2sp, rows)           # (rows, m2)

    args = (p1, w1m, gsel, w2m,
            g2.reshape(1, c2), b2.reshape(1, c2), w3t, gsum)

    out_slab = pl.pallas_call(
        _disc_fused_kernel,
        out_shape=jax.ShapeDtypeStruct((rows, 128), jnp.float32),
        grid=(1,),
        in_specs=[_vmem_full_spec(a) for a in args],
        out_specs=pl.BlockSpec((rows, 128), lambda i: (0, 0)),
        compiler_params=pltpu.CompilerParams(
            dimension_semantics=("arbitrary",),
            vmem_limit_bytes=32 * 1024 * 1024),
    )(*args)

    return out_slab[:N, 0]                                  # (N,)


# ------------------------------- reference -----------------------------------

def reference_forward(x, params):
    w1, w2, g2, b2, w3 = params

    def conv(x, w, s, p):
        return jax.lax.conv_general_dilated(
            x, w, (s, s), ((p, p), (p, p)),
            dimension_numbers=("NCHW", "OIHW", "NCHW"))

    y = conv(x, w1, 2, 1)
    y = jnp.where(y > 0, y, 0.2 * y)
    y = conv(y, w2, 2, 1)
    m = y.mean(axis=(0, 2, 3), keepdims=True)
    v = ((y - m) ** 2).mean(axis=(0, 2, 3), keepdims=True)
    y = (y - m) * jax.lax.rsqrt(v + 1e-5)
    y = y * g2.reshape(1, -1, 1, 1) + b2.reshape(1, -1, 1, 1)
    y = jnp.where(y > 0, y, 0.2 * y)
    y = conv(y, w3, 1, 0)
    y = jax.nn.sigmoid(y)
    return y.reshape(-1)


# --------------------------------- main ---------------------------------------

if __name__ == "__main__":
    feature_maps = 16
    image_channels = 3
    N, H, W = 2, 16, 16

    key = jax.random.PRNGKey(0)
    k_x, k_w1, k_w2, k_g2, k_b2, k_w3 = jax.random.split(key, 6)

    x = jax.random.normal(k_x, (N, image_channels, H, W), dtype=jnp.float32)

    # Deterministic synthetic parameters (DCGAN-style small normals).
    w1 = 0.05 * jax.random.normal(k_w1, (feature_maps, image_channels, 4, 4), jnp.float32)
    w2 = 0.05 * jax.random.normal(k_w2, (2 * feature_maps, feature_maps, 4, 4), jnp.float32)
    g2 = 1.0 + 0.02 * jax.random.normal(k_g2, (2 * feature_maps,), jnp.float32)
    b2 = 0.02 * jax.random.normal(k_b2, (2 * feature_maps,), jnp.float32)
    w3 = 0.05 * jax.random.normal(k_w3, (1, 2 * feature_maps, 4, 4), jnp.float32)
    params = (w1, w2, g2, b2, w3)

    out = jax.block_until_ready(discriminator_forward(x, params))
    ref = jax.block_until_ready(reference_forward(x, params))

    assert out.shape == (N,), out.shape
    np.testing.assert_allclose(np.asarray(out), np.asarray(ref), atol=1e-4, rtol=1e-4)

    print("KERNEL_OK")
</pallas_src>

<mosaic_0001>
module attributes {stable_mosaic.version = 11 : i64} {
  func.func @_disc_fused_kernel(%arg0: i32, %arg1: memref<128x48xf32, #tpu.memory_space<vmem>>, %arg2: memref<48x16xf32, #tpu.memory_space<vmem>>, %arg3: memref<512x128xf32, #tpu.memory_space<vmem>>, %arg4: memref<256x32xf32, #tpu.memory_space<vmem>>, %arg5: memref<1x32xf32, #tpu.memory_space<vmem>>, %arg6: memref<1x32xf32, #tpu.memory_space<vmem>>, %arg7: memref<32x32xf32, #tpu.memory_space<vmem>>, %arg8: memref<8x32xf32, #tpu.memory_space<vmem>>, %arg9: memref<8x128xf32, #tpu.memory_space<vmem>>) attributes {dimension_semantics = [#tpu.dimension_semantics<arbitrary>], iteration_bounds = array<i64: 1>, scalar_prefetch = 0 : i64, scratch_operands = 0 : i64, tpu.core_type = #tpu.core_type<tc>, window_params = [{pipeline_mode = #tpu.pipeline_mode<synchronous>, transform_indices = @transform_0, window_bounds = array<i64: 128, 48>}, {pipeline_mode = #tpu.pipeline_mode<synchronous>, transform_indices = @transform_1, window_bounds = array<i64: 48, 16>}, {pipeline_mode = #tpu.pipeline_mode<synchronous>, transform_indices = @transform_2, window_bounds = array<i64: 512, 128>}, {pipeline_mode = #tpu.pipeline_mode<synchronous>, transform_indices = @transform_3, window_bounds = array<i64: 256, 32>}, {pipeline_mode = #tpu.pipeline_mode<synchronous>, transform_indices = @transform_4, window_bounds = array<i64: 1, 32>}, {pipeline_mode = #tpu.pipeline_mode<synchronous>, transform_indices = @transform_5, window_bounds = array<i64: 1, 32>}, {pipeline_mode = #tpu.pipeline_mode<synchronous>, transform_indices = @transform_6, window_bounds = array<i64: 32, 32>}, {pipeline_mode = #tpu.pipeline_mode<synchronous>, transform_indices = @transform_7, window_bounds = array<i64: 8, 32>}, {pipeline_mode = #tpu.pipeline_mode<synchronous>, transform_indices = @transform_8, window_bounds = array<i64: 8, 128>}]} {
    %c0 = arith.constant 0 : index
    %c0_0 = arith.constant 0 : index
    %0 = vector.load %arg1[%c0, %c0_0] : memref<128x48xf32, #tpu.memory_space<vmem>>, vector<128x48xf32>
    %c0_1 = arith.constant 0 : index
    %c0_2 = arith.constant 0 : index
    %1 = vector.load %arg2[%c0_1, %c0_2] : memref<48x16xf32, #tpu.memory_space<vmem>>, vector<48x16xf32>
    %cst = arith.constant dense<0.000000e+00> : vector<128x16xf32>
    %2 = tpu.matmul %0, %1, %cst {dimension_numbers = #tpu.dot_dimension_numbers<[1], [0], [0], [1], [0, 0, 1, 1], [], []>} : vector<128x48xf32>, vector<48x16xf32>, vector<128x16xf32> -> vector<128x16xf32>
    %cst_3 = arith.constant 0.000000e+00 : f32
    %3 = vector.broadcast %cst_3 : f32 to vector<128x16xf32>
    %4 = arith.cmpf ogt, %2, %3 : vector<128x16xf32>
    %cst_4 = arith.constant 2.000000e-01 : f32
    %5 = vector.broadcast %cst_4 : f32 to vector<128x16xf32>
    %6 = arith.mulf %5, %2 : vector<128x16xf32>
    %7 = arith.select %4, %2, %6 : vector<128x16xi1>, vector<128x16xf32>
    %c0_5 = arith.constant 0 : index
    %c0_6 = arith.constant 0 : index
    %8 = vector.load %arg3[%c0_5, %c0_6] : memref<512x128xf32, #tpu.memory_space<vmem>>, vector<512x128xf32>
    %cst_7 = arith.constant dense<0.000000e+00> : vector<512x16xf32>
    %9 = tpu.matmul %8, %7, %cst_7 {dimension_numbers = #tpu.dot_dimension_numbers<[1], [0], [0], [1], [0, 0, 1, 1], [], []>} : vector<512x128xf32>, vector<128x16xf32>, vector<512x16xf32> -> vector<512x16xf32>
    %10 = vector.extract_strided_slice %9 {offsets = [0, 0], sizes = [32, 16], strides = [1, 1]} : vector<512x16xf32> to vector<32x16xf32>
    %c0_8 = arith.constant 0 : index
    %c0_9 = arith.constant 0 : index
    %11 = vector.load %arg4[%c0_8, %c0_9] : memref<256x32xf32, #tpu.memory_space<vmem>>, vector<16x32xf32>
    %cst_10 = arith.constant dense<0.000000e+00> : vector<32x32xf32>
    %12 = tpu.matmul %10, %11, %cst_10 {dimension_numbers = #tpu.dot_dimension_numbers<[1], [0], [0], [1], [0, 0, 1, 1], [], []>} : vector<32x16xf32>, vector<16x32xf32>, vector<32x32xf32> -> vector<32x32xf32>
    %13 = vector.extract_strided_slice %9 {offsets = [32, 0], sizes = [32, 16], strides = [1, 1]} : vector<512x16xf32> to vector<32x16xf32>
    %c16 = arith.constant 16 : index
    %c0_11 = arith.constant 0 : index
    %14 = vector.load %arg4[%c16, %c0_11] : memref<256x32xf32, #tpu.memory_space<vmem>>, vector<16x32xf32>
    %cst_12 = arith.constant dense<0.000000e+00> : vector<32x32xf32>
    %15 = tpu.matmul %13, %14, %cst_12 {dimension_numbers = #tpu.dot_dimension_numbers<[1], [0], [0], [1], [0, 0, 1, 1], [], []>} : vector<32x16xf32>, vector<16x32xf32>, vector<32x32xf32> -> vector<32x32xf32>
    %16 = arith.addf %12, %15 : vector<32x32xf32>
    %17 = vector.extract_strided_slice %9 {offsets = [64, 0], sizes = [32, 16], strides = [1, 1]} : vector<512x16xf32> to vector<32x16xf32>
    %c32 = arith.constant 32 : index
    %c0_13 = arith.constant 0 : index
    %18 = vector.load %arg4[%c32, %c0_13] : memref<256x32xf32, #tpu.memory_space<vmem>>, vector<16x32xf32>
    %cst_14 = arith.constant dense<0.000000e+00> : vector<32x32xf32>
    %19 = tpu.matmul %17, %18, %cst_14 {dimension_numbers = #tpu.dot_dimension_numbers<[1], [0], [0], [1], [0, 0, 1, 1], [], []>} : vector<32x16xf32>, vector<16x32xf32>, vector<32x32xf32> -> vector<32x32xf32>
    %20 = arith.addf %16, %19 : vector<32x32xf32>
    %21 = vector.extract_strided_slice %9 {offsets = [96, 0], sizes = [32, 16], strides = [1, 1]} : vector<512x16xf32> to vector<32x16xf32>
    %c48 = arith.constant 48 : index
    %c0_15 = arith.constant 0 : index
    %22 = vector.load %arg4[%c48, %c0_15] : memref<256x32xf32, #tpu.memory_space<vmem>>, vector<16x32xf32>
    %cst_16 = arith.constant dense<0.000000e+00> : vector<32x32xf32>
    %23 = tpu.matmul %21, %22, %cst_16 {dimension_numbers = #tpu.dot_dimension_numbers<[1], [0], [0], [1], [0, 0, 1, 1], [], []>} : vector<32x16xf32>, vector<16x32xf32>, vector<32x32xf32> -> vector<32x32xf32>
    %24 = arith.addf %20, %23 : vector<32x32xf32>
    %25 = vector.extract_strided_slice %9 {offsets = [128, 0], sizes = [32, 16], strides = [1, 1]} : vector<512x16xf32> to vector<32x16xf32>
    %c64 = arith.constant 64 : index
    %c0_17 = arith.constant 0 : index
    %26 = vector.load %arg4[%c64, %c0_17] : memref<256x32xf32, #tpu.memory_space<vmem>>, vector<16x32xf32>
    %cst_18 = arith.constant dense<0.000000e+00> : vector<32x32xf32>
    %27 = tpu.matmul %25, %26, %cst_18 {dimension_numbers = #tpu.dot_dimension_numbers<[1], [0], [0], [1], [0, 0, 1, 1], [], []>} : vector<32x16xf32>, vector<16x32xf32>, vector<32x32xf32> -> vector<32x32xf32>
    %28 = arith.addf %24, %27 : vector<32x32xf32>
    %29 = vector.extract_strided_slice %9 {offsets = [160, 0], sizes = [32, 16], strides = [1, 1]} : vector<512x16xf32> to vector<32x16xf32>
    %c80 = arith.constant 80 : index
    %c0_19 = arith.constant 0 : index
    %30 = vector.load %arg4[%c80, %c0_19] : memref<256x32xf32, #tpu.memory_space<vmem>>, vector<16x32xf32>
    %cst_20 = arith.constant dense<0.000000e+00> : vector<32x32xf32>
    %31 = tpu.matmul %29, %30, %cst_20 {dimension_numbers = #tpu.dot_dimension_numbers<[1], [0], [0], [1], [0, 0, 1, 1], [], []>} : vector<32x16xf32>, vector<16x32xf32>, vector<32x32xf32> -> vector<32x32xf32>
    %32 = arith.addf %28, %31 : vector<32x32xf32>
    %33 = vector.extract_strided_slice %9 {offsets = [192, 0], sizes = [32, 16], strides = [1, 1]} : vector<512x16xf32> to vector<32x16xf32>
    %c96 = arith.constant 96 : index
    %c0_21 = arith.constant 0 : index
    %34 = vector.load %arg4[%c96, %c0_21] : memref<256x32xf32, #tpu.memory_space<vmem>>, vector<16x32xf32>
    %cst_22 = arith.constant dense<0.000000e+00> : vector<32x32xf32>
    %35 = tpu.matmul %33, %34, %cst_22 {dimension_numbers = #tpu.dot_dimension_numbers<[1], [0], [0], [1], [0, 0, 1, 1], [], []>} : vector<32x16xf32>, vector<16x32xf32>, vector<32x32xf32> -> vector<32x32xf32>
    %36 = arith.addf %32, %35 : vector<32x32xf32>
    %37 = vector.extract_strided_slice %9 {offsets = [224, 0], sizes = [32, 16], strides = [1, 1]} : vector<512x16xf32> to vector<32x16xf32>
    %c112 = arith.constant 112 : index
    %c0_23 = arith.constant 0 : index
    %38 = vector.load %arg4[%c112, %c0_23] : memref<256x32xf32, #tpu.memory_space<vmem>>, vector<16x32xf32>
    %cst_24 = arith.constant dense<0.000000e+00> : vector<32x32xf32>
    %39 = tpu.matmul %37, %38, %cst_24 {dimension_numbers = #tpu.dot_dimension_numbers<[1], [0], [0], [1], [0, 0, 1, 1], [], []>} : vector<32x16xf32>, vector<16x32xf32>, vector<32x32xf32> -> vector<32x32xf32>
    %40 = arith.addf %36, %39 : vector<32x32xf32>
    %41 = vector.extract_strided_slice %9 {offsets = [256, 0], sizes = [32, 16], strides = [1, 1]} : vector<512x16xf32> to vector<32x16xf32>
    %c128 = arith.constant 128 : index
    %c0_25 = arith.constant 0 : index
    %42 = vector.load %arg4[%c128, %c0_25] : memref<256x32xf32, #tpu.memory_space<vmem>>, vector<16x32xf32>
    %cst_26 = arith.constant dense<0.000000e+00> : vector<32x32xf32>
    %43 = tpu.matmul %41, %42, %cst_26 {dimension_numbers = #tpu.dot_dimension_numbers<[1], [0], [0], [1], [0, 0, 1, 1], [], []>} : vector<32x16xf32>, vector<16x32xf32>, vector<32x32xf32> -> vector<32x32xf32>
    %44 = arith.addf %40, %43 : vector<32x32xf32>
    %45 = vector.extract_strided_slice %9 {offsets = [288, 0], sizes = [32, 16], strides = [1, 1]} : vector<512x16xf32> to vector<32x16xf32>
    %c144 = arith.constant 144 : index
    %c0_27 = arith.constant 0 : index
    %46 = vector.load %arg4[%c144, %c0_27] : memref<256x32xf32, #tpu.memory_space<vmem>>, vector<16x32xf32>
    %cst_28 = arith.constant dense<0.000000e+00> : vector<32x32xf32>
    %47 = tpu.matmul %45, %46, %cst_28 {dimension_numbers = #tpu.dot_dimension_numbers<[1], [0], [0], [1], [0, 0, 1, 1], [], []>} : vector<32x16xf32>, vector<16x32xf32>, vector<32x32xf32> -> vector<32x32xf32>
    %48 = arith.addf %44, %47 : vector<32x32xf32>
    %49 = vector.extract_strided_slice %9 {offsets = [320, 0], sizes = [32, 16], strides = [1, 1]} : vector<512x16xf32> to vector<32x16xf32>
    %c160 = arith.constant 160 : index
    %c0_29 = arith.constant 0 : index
    %50 = vector.load %arg4[%c160, %c0_29] : memref<256x32xf32, #tpu.memory_space<vmem>>, vector<16x32xf32>
    %cst_30 = arith.constant dense<0.000000e+00> : vector<32x32xf32>
    %51 = tpu.matmul %49, %50, %cst_30 {dimension_numbers = #tpu.dot_dimension_numbers<[1], [0], [0], [1], [0, 0, 1, 1], [], []>} : vector<32x16xf32>, vector<16x32xf32>, vector<32x32xf32> -> vector<32x32xf32>
    %52 = arith.addf %48, %51 : vector<32x32xf32>
    %53 = vector.extract_strided_slice %9 {offsets = [352, 0], sizes = [32, 16], strides = [1, 1]} : vector<512x16xf32> to vector<32x16xf32>
    %c176 = arith.constant 176 : index
    %c0_31 = arith.constant 0 : index
    %54 = vector.load %arg4[%c176, %c0_31] : memref<256x32xf32, #tpu.memory_space<vmem>>, vector<16x32xf32>
    %cst_32 = arith.constant dense<0.000000e+00> : vector<32x32xf32>
    %55 = tpu.matmul %53, %54, %cst_32 {dimension_numbers = #tpu.dot_dimension_numbers<[1], [0], [0], [1], [0, 0, 1, 1], [], []>} : vector<32x16xf32>, vector<16x32xf32>, vector<32x32xf32> -> vector<32x32xf32>
    %56 = arith.addf %52, %55 : vector<32x32xf32>
    %57 = vector.extract_strided_slice %9 {offsets = [384, 0], sizes = [32, 16], strides = [1, 1]} : vector<512x16xf32> to vector<32x16xf32>
    %c192 = arith.constant 192 : index
    %c0_33 = arith.constant 0 : index
    %58 = vector.load %arg4[%c192, %c0_33] : memref<256x32xf32, #tpu.memory_space<vmem>>, vector<16x32xf32>
    %cst_34 = arith.constant dense<0.000000e+00> : vector<32x32xf32>
    %59 = tpu.matmul %57, %58, %cst_34 {dimension_numbers = #tpu.dot_dimension_numbers<[1], [0], [0], [1], [0, 0, 1, 1], [], []>} : vector<32x16xf32>, vector<16x32xf32>, vector<32x32xf32> -> vector<32x32xf32>
    %60 = arith.addf %56, %59 : vector<32x32xf32>
    %61 = vector.extract_strided_slice %9 {offsets = [416, 0], sizes = [32, 16], strides = [1, 1]} : vector<512x16xf32> to vector<32x16xf32>
    %c208 = arith.constant 208 : index
    %c0_35 = arith.constant 0 : index
    %62 = vector.load %arg4[%c208, %c0_35] : memref<256x32xf32, #tpu.memory_space<vmem>>, vector<16x32xf32>
    %cst_36 = arith.constant dense<0.000000e+00> : vector<32x32xf32>
    %63 = tpu.matmul %61, %62, %cst_36 {dimension_numbers = #tpu.dot_dimension_numbers<[1], [0], [0], [1], [0, 0, 1, 1], [], []>} : vector<32x16xf32>, vector<16x32xf32>, vector<32x32xf32> -> vector<32x32xf32>
    %64 = arith.addf %60, %63 : vector<32x32xf32>
    %65 = vector.extract_strided_slice %9 {offsets = [448, 0], sizes = [32, 16], strides = [1, 1]} : vector<512x16xf32> to vector<32x16xf32>
    %c224 = arith.constant 224 : index
    %c0_37 = arith.constant 0 : index
    %66 = vector.load %arg4[%c224, %c0_37] : memref<256x32xf32, #tpu.memory_space<vmem>>, vector<16x32xf32>
    %cst_38 = arith.constant dense<0.000000e+00> : vector<32x32xf32>
    %67 = tpu.matmul %65, %66, %cst_38 {dimension_numbers = #tpu.dot_dimension_numbers<[1], [0], [0], [1], [0, 0, 1, 1], [], []>} : vector<32x16xf32>, vector<16x32xf32>, vector<32x32xf32> -> vector<32x32xf32>
    %68 = arith.addf %64, %67 : vector<32x32xf32>
    %69 = vector.extract_strided_slice %9 {offsets = [480, 0], sizes = [32, 16], strides = [1, 1]} : vector<512x16xf32> to vector<32x16xf32>
    %c240 = arith.constant 240 : index
    %c0_39 = arith.constant 0 : index
    %70 = vector.load %arg4[%c240, %c0_39] : memref<256x32xf32, #tpu.memory_space<vmem>>, vector<16x32xf32>
    %cst_40 = arith.constant dense<0.000000e+00> : vector<32x32xf32>
    %71 = tpu.matmul %69, %70, %cst_40 {dimension_numbers = #tpu.dot_dimension_numbers<[1], [0], [0], [1], [0, 0, 1, 1], [], []>} : vector<32x16xf32>, vector<16x32xf32>, vector<32x32xf32> -> vector<32x32xf32>
    %72 = arith.addf %68, %71 : vector<32x32xf32>
    %cst_41 = arith.constant dense<0.000000e+00> : vector<32xf32>
    %73 = vector.multi_reduction <add>, %72, %cst_41 [0] : vector<32x32xf32> to vector<32xf32>
    %74 = vector.shape_cast %73 : vector<32xf32> to vector<1x32xf32>
    %cst_42 = arith.constant 3.200000e+01 : f32
    %75 = vector.broadcast %cst_42 : f32 to vector<1x32xf32>
    %76 = arith.divf %74, %75 : vector<1x32xf32>
    %77 = vector.broadcast %76 : vector<1x32xf32> to vector<32x32xf32>
    %78 = arith.subf %72, %77 : vector<32x32xf32>
    %79 = arith.mulf %78, %78 : vector<32x32xf32>
    %cst_43 = arith.constant dense<0.000000e+00> : vector<32xf32>
    %80 = vector.multi_reduction <add>, %79, %cst_43 [0] : vector<32x32xf32> to vector<32xf32>
    %81 = vector.shape_cast %80 : vector<32xf32> to vector<1x32xf32>
    %cst_44 = arith.constant 3.200000e+01 : f32
    %82 = vector.broadcast %cst_44 : f32 to vector<1x32xf32>
    %83 = arith.divf %81, %82 : vector<1x32xf32>
    %cst_45 = arith.constant 9.99999974E-6 : f32
    %84 = vector.broadcast %cst_45 : f32 to vector<1x32xf32>
    %85 = arith.addf %83, %84 : vector<1x32xf32>
    %86 = math.rsqrt %85 : vector<1x32xf32>
    %87 = vector.broadcast %86 : vector<1x32xf32> to vector<32x32xf32>
    %88 = arith.mulf %78, %87 : vector<32x32xf32>
    %c0_46 = arith.constant 0 : index
    %c0_47 = arith.constant 0 : index
    %89 = vector.load %arg5[%c0_46, %c0_47] : memref<1x32xf32, #tpu.memory_space<vmem>>, vector<1x32xf32>
    %90 = vector.broadcast %89 : vector<1x32xf32> to vector<32x32xf32>
    %91 = arith.mulf %88, %90 : vector<32x32xf32>
    %c0_48 = arith.constant 0 : index
    %c0_49 = arith.constant 0 : index
    %92 = vector.load %arg6[%c0_48, %c0_49] : memref<1x32xf32, #tpu.memory_space<vmem>>, vector<1x32xf32>
    %93 = vector.broadcast %92 : vector<1x32xf32> to vector<32x32xf32>
    %94 = arith.addf %91, %93 : vector<32x32xf32>
    %cst_50 = arith.constant 0.000000e+00 : f32
    %95 = vector.broadcast %cst_50 : f32 to vector<32x32xf32>
    %96 = arith.cmpf ogt, %94, %95 : vector<32x32xf32>
    %cst_51 = arith.constant 2.000000e-01 : f32
    %97 = vector.broadcast %cst_51 : f32 to vector<32x32xf32>
    %98 = arith.mulf %97, %94 : vector<32x32xf32>
    %99 = arith.select %96, %94, %98 : vector<32x32xi1>, vector<32x32xf32>
    %c0_52 = arith.constant 0 : index
    %c0_53 = arith.constant 0 : index
    %100 = vector.load %arg7[%c0_52, %c0_53] : memref<32x32xf32, #tpu.memory_space<vmem>>, vector<32x32xf32>
    %101 = arith.mulf %99, %100 : vector<32x32xf32>
    %c0_54 = arith.constant 0 : index
    %c0_55 = arith.constant 0 : index
    %102 = vector.load %arg8[%c0_54, %c0_55] : memref<8x32xf32, #tpu.memory_space<vmem>>, vector<8x32xf32>
    %cst_56 = arith.constant dense<0.000000e+00> : vector<8x32xf32>
    %103 = tpu.matmul %102, %101, %cst_56 {dimension_numbers = #tpu.dot_dimension_numbers<[1], [0], [0], [1], [0, 0, 1, 1], [], []>} : vector<8x32xf32>, vector<32x32xf32>, vector<8x32xf32> -> vector<8x32xf32>
    %cst_57 = arith.constant dense<0.000000e+00> : vector<8xf32>
    %104 = vector.multi_reduction <add>, %103, %cst_57 [1] : vector<8x32xf32> to vector<8xf32>
    %105 = vector.shape_cast %104 : vector<8xf32> to vector<8x1xf32>
    %106 = arith.negf %105 : vector<8x1xf32>
    %107 = math.exp %106 : vector<8x1xf32>
    %cst_58 = arith.constant 1.000000e+00 : f32
    %108 = vector.broadcast %cst_58 : f32 to vector<8x1xf32>
    %109 = arith.addf %108, %107 : vector<8x1xf32>
    %110 = arith.divf %108, %109 : vector<8x1xf32>
    %111 = vector.shape_cast %110 : vector<8x1xf32> to vector<8x1xf32>
    %112 = vector.broadcast %111 : vector<8x1xf32> to vector<8x128xf32>
    %c0_59 = arith.constant 0 : index
    %c0_60 = arith.constant 0 : index
    %113 = vector.load %arg9[%c0_59, %c0_60] : memref<8x128xf32, #tpu.memory_space<vmem>>, vector<8x128xf32>
    tpu.vector_store %arg9[%c0_59, %c0_60], %112 {strides = array<i32>} : memref<8x128xf32, #tpu.memory_space<vmem>>, vector<8x128xf32>,
    return
  }
  func.func @transform_0(%arg0: i32) -> (i32, i32) {
    %c0_i32 = arith.constant 0 : i32
    %c0_i32_0 = arith.constant 0 : i32
    %c0_i32_1 = arith.constant 0 : i32
    return %c0_i32, %c0_i32_0 : i32, i32
  }
  func.func @transform_1(%arg0: i32) -> (i32, i32) {
    %c0_i32 = arith.constant 0 : i32
    %c0_i32_0 = arith.constant 0 : i32
    %c0_i32_1 = arith.constant 0 : i32
    return %c0_i32, %c0_i32_0 : i32, i32
  }
  func.func @transform_2(%arg0: i32) -> (i32, i32) {
    %c0_i32 = arith.constant 0 : i32
    %c0_i32_0 = arith.constant 0 : i32
    %c0_i32_1 = arith.constant 0 : i32
    return %c0_i32, %c0_i32_0 : i32, i32
  }
  func.func @transform_3(%arg0: i32) -> (i32, i32) {
    %c0_i32 = arith.constant 0 : i32
    %c0_i32_0 = arith.constant 0 : i32
    %c0_i32_1 = arith.constant 0 : i32
    return %c0_i32, %c0_i32_0 : i32, i32
  }
  func.func @transform_4(%arg0: i32) -> (i32, i32) {
    %c0_i32 = arith.constant 0 : i32
    %c0_i32_0 = arith.constant 0 : i32
    %c0_i32_1 = arith.constant 0 : i32
    return %c0_i32, %c0_i32_0 : i32, i32
  }
  func.func @transform_5(%arg0: i32) -> (i32, i32) {
    %c0_i32 = arith.constant 0 : i32
    %c0_i32_0 = arith.constant 0 : i32
    %c0_i32_1 = arith.constant 0 : i32
    return %c0_i32, %c0_i32_0 : i32, i32
  }
  func.func @transform_6(%arg0: i32) -> (i32, i32) {
    %c0_i32 = arith.constant 0 : i32
    %c0_i32_0 = arith.constant 0 : i32
    %c0_i32_1 = arith.constant 0 : i32
    return %c0_i32, %c0_i32_0 : i32, i32
  }
  func.func @transform_7(%arg0: i32) -> (i32, i32) {
    %c0_i32 = arith.constant 0 : i32
    %c0_i32_0 = arith.constant 0 : i32
    %c0_i32_1 = arith.constant 0 : i32
    return %c0_i32, %c0_i32_0 : i32, i32
  }
  func.func @transform_8(%arg0: i32) -> (i32, i32) {
    %c0_i32 = arith.constant 0 : i32
    %c0_i32_0 = arith.constant 0 : i32
    %c0_i32_1 = arith.constant 0 : i32
    return %c0_i32, %c0_i32_0 : i32, i32
  }
}

</mosaic_0001>

<llo_original>
// kernel: discriminator_forward.1
$region0: #{discriminator_forward.1}
  #allocation0 [shape = 'u32[]', space=smem, size = 0x4, offset = 0x4, fixed_abs, tag = 'smem constant byte address 0x4 - core index']
  #allocation1 [shape = 'u32[72,128]{1,0:T(1,128)}', space=vmem, size = 0x9000, scoped, tag = 'internal scratch']
  %s0 = inlined_call_operand.vmem [shape: f32[128,48], index: 0, kind: input, shape index: {}]
  %s1 = inlined_call_operand.vmem [shape: f32[48,16], index: 1, kind: input, shape index: {}]
  %s2 = inlined_call_operand.vmem [shape: f32[512,128], index: 2, kind: input, shape index: {}]
  %s3 = inlined_call_operand.vmem [shape: f32[256,32], index: 3, kind: input, shape index: {}]
  %s4 = inlined_call_operand.vmem [shape: f32[1,32], index: 4, kind: input, shape index: {}]
  %s5 = inlined_call_operand.vmem [shape: f32[1,32], index: 5, kind: input, shape index: {}]
  %s6 = inlined_call_operand.vmem [shape: f32[32,32], index: 6, kind: input, shape index: {}]
  %s7 = inlined_call_operand.vmem [shape: f32[8,32], index: 7, kind: input, shape index: {}]
  %s8 = inlined_call_operand.vmem [shape: f32[8,128], index: 8, kind: output, shape index: {}]
  %s9 = sld [smem:[#allocation0]]
  $region42: #{discriminator_forward.1} parent=0
    _
  %s11 = ssub.s32 1, %s9
  %s12 = scalar_select 0, %s11, %s9
  // Predicated region
  $region2: #{discriminator_forward.1} parent=0 // pred_check
    _
  $region3: #{discriminator_forward.1} parent=0 // pred_check_branch
    %14 = sbr.rel (0) target = $region5
  $region4: #{discriminator_forward.1} parent=0 // pred_region
    _
  $region5: #{discriminator_forward.1} parent=0 // pred_fallthru
    _
  // Predicated region
  $region6: #{discriminator_forward.1} parent=0 // pred_check
    _
  $region7: #{discriminator_forward.1} parent=0 // pred_check_branch
    %16 = sbr.rel (0) target = $region9
  $region8: #{discriminator_forward.1} parent=0 // pred_region
    _
  $region9: #{discriminator_forward.1} parent=0 // pred_fallthru
    _
  // Predicated region
  $region10: #{discriminator_forward.1} parent=0 // pred_check
    _
  $region11: #{discriminator_forward.1} parent=0 // pred_check_branch
    %18 = sbr.rel (0) target = $region13
  $region12: #{discriminator_forward.1} parent=0 // pred_region
    _
  $region13: #{discriminator_forward.1} parent=0 // pred_fallthru
    _
  // Predicated region
  $region14: #{discriminator_forward.1} parent=0 // pred_check
    _
  $region15: #{discriminator_forward.1} parent=0 // pred_check_branch
    %20 = sbr.rel (0) target = $region17
  $region16: #{discriminator_forward.1} parent=0 // pred_region
    _
  $region17: #{discriminator_forward.1} parent=0 // pred_fallthru
    _
  // Predicated region
  $region18: #{discriminator_forward.1} parent=0 // pred_check
    _
  $region19: #{discriminator_forward.1} parent=0 // pred_check_branch
    %22 = sbr.rel (0) target = $region21
  $region20: #{discriminator_forward.1} parent=0 // pred_region
    _
  $region21: #{discriminator_forward.1} parent=0 // pred_fallthru
    _
  // Predicated region
  $region22: #{discriminator_forward.1} parent=0 // pred_check
    _
  $region23: #{discriminator_forward.1} parent=0 // pred_check_branch
    %24 = sbr.rel (0) target = $region25
  $region24: #{discriminator_forward.1} parent=0 // pred_region
    _
  $region25: #{discriminator_forward.1} parent=0 // pred_fallthru
    _
  // Predicated region
  $region26: #{discriminator_forward.1} parent=0 // pred_check
    _
  $region27: #{discriminator_forward.1} parent=0 // pred_check_branch
    %26 = sbr.rel (0) target = $region29
  $region28: #{discriminator_forward.1} parent=0 // pred_region
    _
  $region29: #{discriminator_forward.1} parent=0 // pred_fallthru
    _
  // Predicated region
  $region30: #{discriminator_forward.1} parent=0 // pred_check
    _
  $region31: #{discriminator_forward.1} parent=0 // pred_check_branch
    %28 = sbr.rel (0) target = $region33
  $region32: #{discriminator_forward.1} parent=0 // pred_region
    _
  $region33: #{discriminator_forward.1} parent=0 // pred_fallthru
    _
  %v29 = vld [vmem:[%s0] sm:$0xff]
  %v30 = vld [vmem:[%s0 + $0x8] sm:$0xff]
  %v31 = vld [vmem:[%s0 + $0x10] sm:$0xff]
  %v32 = vld [vmem:[%s0 + $0x18] sm:$0xff]
  %v33 = vld [vmem:[%s0 + $0x20] sm:$0xff]
  %v34 = vld [vmem:[%s0 + $0x28] sm:$0xff]
  %v35 = vld [vmem:[%s0 + $0x30] sm:$0xff]
  %v36 = vld [vmem:[%s0 + $0x38] sm:$0xff]
  %v37 = vld [vmem:[%s0 + $0x40] sm:$0xff]
  %v38 = vld [vmem:[%s0 + $0x48] sm:$0xff]
  %v39 = vld [vmem:[%s0 + $0x50] sm:$0xff]
  %v40 = vld [vmem:[%s0 + $0x58] sm:$0xff]
  %v41 = vld [vmem:[%s0 + $0x60] sm:$0xff]
  %v42 = vld [vmem:[%s0 + $0x68] sm:$0xff]
  %v43 = vld [vmem:[%s0 + $0x70] sm:$0xff]
  %v44 = vld [vmem:[%s0 + $0x78] sm:$0xff]
  %v45 = vld [vmem:[%s1] sm:$0xff]
  %v46 = vld [vmem:[%s1 + $0x8] sm:$0xff]
  %v47 = vld [vmem:[%s1 + $0x10] sm:$0xff]
  %v48 = vld [vmem:[%s1 + $0x18] sm:$0xff]
  %v49 = vld [vmem:[%s1 + $0x20] sm:$0xff]
  %v50 = vld [vmem:[%s1 + $0x28] sm:$0xff]
  %vm51 = vcmask 392192
  %v53 = vsel %vm51, %v29, 0
  %v56 = vsel %vm51, %v30, 0
  %v59 = vsel %vm51, %v31, 0
  %v62 = vsel %vm51, %v32, 0
  %v65 = vsel %vm51, %v33, 0
  %v68 = vsel %vm51, %v34, 0
  %v71 = vsel %vm51, %v35, 0
  %v74 = vsel %vm51, %v36, 0
  %v77 = vsel %vm51, %v37, 0
  %v80 = vsel %vm51, %v38, 0
  %v83 = vsel %vm51, %v39, 0
  %v86 = vsel %vm51, %v40, 0
  %v89 = vsel %vm51, %v41, 0
  %v92 = vsel %vm51, %v42, 0
  %v95 = vsel %vm51, %v43, 0
  %v98 = vsel %vm51, %v44, 0
  %100 = vmatpush.msra.mxu0 0.0
  %101 = vmatpush.msra.mxu0 0.0
  %102 = vmatpush.msra.mxu0 0.0
  %103 = vmatpush.msra.mxu0 0.0
  %104 = vmatpush.msra.mxu0 0.0
  %105 = vmatpush.msra.mxu0 0.0
  %106 = vmatpush.msra.mxu0 0.0
  %107 = vmatpush.msra.mxu0 0.0
  %108 = vmatpush.msra.mxu0 0.0
  %109 = vmatpush.msra.mxu0 0.0
  %110 = vmatpush.msra.mxu0 %v50
  %111 = vmatpush.msra.mxu0 %v49
  %112 = vmatpush.msra.mxu0 %v48
  %113 = vmatpush.msra.mxu0 %v47
  %114 = vmatpush.msra.mxu0 %v46
  %115 = vmatpush.msra.mxu0 %v45
  %116 = vmatmul.f32.gmra.mxu0 %v53
  %v117 = vpop.f32.mrf.mxu0
  %v118 = vadd.f32 0.0, %v117
  %119 = vmatmul.f32.gmra.mxu0 %v56
  %v120 = vpop.f32.mrf.mxu0
  %v121 = vadd.f32 0.0, %v120
  %122 = vmatmul.f32.gmra.mxu0 %v59
  %v123 = vpop.f32.mrf.mxu0
  %v124 = vadd.f32 0.0, %v123
  %125 = vmatmul.f32.gmra.mxu0 %v62
  %v126 = vpop.f32.mrf.mxu0
  %v127 = vadd.f32 0.0, %v126
  %128 = vmatmul.f32.gmra.mxu0 %v65
  %v129 = vpop.f32.mrf.mxu0
  %v130 = vadd.f32 0.0, %v129
  %131 = vmatmul.f32.gmra.mxu0 %v68
  %v132 = vpop.f32.mrf.mxu0
  %v133 = vadd.f32 0.0, %v132
  %134 = vmatmul.f32.gmra.mxu0 %v71
  %v135 = vpop.f32.mrf.mxu0
  %v136 = vadd.f32 0.0, %v135
  %137 = vmatmul.f32.gmra.mxu0 %v74
  %v138 = vpop.f32.mrf.mxu0
  %v139 = vadd.f32 0.0, %v138
  %140 = vmatmul.f32.gmra.mxu0 %v77
  %v141 = vpop.f32.mrf.mxu0
  %v142 = vadd.f32 0.0, %v141
  %143 = vmatmul.f32.gmra.mxu0 %v80
  %v144 = vpop.f32.mrf.mxu0
  %v145 = vadd.f32 0.0, %v144
  %146 = vmatmul.f32.gmra.mxu0 %v83
  %v147 = vpop.f32.mrf.mxu0
  %v148 = vadd.f32 0.0, %v147
  %149 = vmatmul.f32.gmra.mxu0 %v86
  %v150 = vpop.f32.mrf.mxu0
  %v151 = vadd.f32 0.0, %v150
  %152 = vmatmul.f32.gmra.mxu0 %v89
  %v153 = vpop.f32.mrf.mxu0
  %v154 = vadd.f32 0.0, %v153
  %155 = vmatmul.f32.gmra.mxu0 %v92
  %v156 = vpop.f32.mrf.mxu0
  %v157 = vadd.f32 0.0, %v156
  %158 = vmatmul.f32.gmra.mxu0 %v95
  %v159 = vpop.f32.mrf.mxu0
  %v160 = vadd.f32 0.0, %v159
  %161 = vmatmul.f32.gmra.mxu0 %v98
  %v162 = vpop.f32.mrf.mxu0
  %v163 = vadd.f32 0.0, %v162
  %164 = vdwg.mxu0
  %vm165 = vcmp.gt.f32.partialorder %v118, 0.0
  %vm166 = vcmp.gt.f32.partialorder %v121, 0.0
  %vm167 = vcmp.gt.f32.partialorder %v124, 0.0
  %vm168 = vcmp.gt.f32.partialorder %v127, 0.0
  %vm169 = vcmp.gt.f32.partialorder %v130, 0.0
  %vm170 = vcmp.gt.f32.partialorder %v133, 0.0
  %vm171 = vcmp.gt.f32.partialorder %v136, 0.0
  %vm172 = vcmp.gt.f32.partialorder %v139, 0.0
  %vm173 = vcmp.gt.f32.partialorder %v142, 0.0
  %vm174 = vcmp.gt.f32.partialorder %v145, 0.0
  %vm175 = vcmp.gt.f32.partialorder %v148, 0.0
  %vm176 = vcmp.gt.f32.partialorder %v151, 0.0
  %vm177 = vcmp.gt.f32.partialorder %v154, 0.0
  %vm178 = vcmp.gt.f32.partialorder %v157, 0.0
  %vm179 = vcmp.gt.f32.partialorder %v160, 0.0
  %vm180 = vcmp.gt.f32.partialorder %v163, 0.0
  %v181 = vmul.f32 %v118, 0.2
  %v182 = vmul.f32 %v121, 0.2
  %v183 = vmul.f32 %v124, 0.2
  %v184 = vmul.f32 %v127, 0.2
  %v185 = vmul.f32 %v130, 0.2
  %v186 = vmul.f32 %v133, 0.2
  %v187 = vmul.f32 %v136, 0.2
  %v188 = vmul.f32 %v139, 0.2
  %v189 = vmul.f32 %v142, 0.2
  %v190 = vmul.f32 %v145, 0.2
  %v191 = vmul.f32 %v148, 0.2
  %v192 = vmul.f32 %v151, 0.2
  %v193 = vmul.f32 %v154, 0.2
  %v194 = vmul.f32 %v157, 0.2
  %v195 = vmul.f32 %v160, 0.2
  %v196 = vmul.f32 %v163, 0.2
  %v197 = vsel %vm165, %v118, %v181
  %v198 = vsel %vm166, %v121, %v182
  %v199 = vsel %vm167, %v124, %v183
  %v200 = vsel %vm168, %v127, %v184
  %v201 = vsel %vm169, %v130, %v185
  %v202 = vsel %vm170, %v133, %v186
  %v203 = vsel %vm171, %v136, %v187
  %v204 = vsel %vm172, %v139, %v188
  %v205 = vsel %vm173, %v142, %v189
  %v206 = vsel %vm174, %v145, %v190
  %v207 = vsel %vm175, %v148, %v191
  %v208 = vsel %vm176, %v151, %v192
  %v209 = vsel %vm177, %v154, %v193
  %v210 = vsel %vm178, %v157, %v194
  %v211 = vsel %vm179, %v160, %v195
  %v212 = vsel %vm180, %v163, %v196
  %v213 = vld [vmem:[%s2] sm:$0xff]
  %v214 = vld [vmem:[%s2 + $0x8] sm:$0xff]
  %v215 = vld [vmem:[%s2 + $0x10] sm:$0xff]
  %v216 = vld [vmem:[%s2 + $0x18] sm:$0xff]
  %v217 = vld [vmem:[%s2 + $0x20] sm:$0xff]
  %v218 = vld [vmem:[%s2 + $0x28] sm:$0xff]
  %v219 = vld [vmem:[%s2 + $0x30] sm:$0xff]
  %v220 = vld [vmem:[%s2 + $0x38] sm:$0xff]
  %v221 = vld [vmem:[%s2 + $0x40] sm:$0xff]
  %v222 = vld [vmem:[%s2 + $0x48] sm:$0xff]
  %v223 = vld [vmem:[%s2 + $0x50] sm:$0xff]
  %v224 = vld [vmem:[%s2 + $0x58] sm:$0xff]
  %v225 = vld [vmem:[%s2 + $0x60] sm:$0xff]
  %v226 = vld [vmem:[%s2 + $0x68] sm:$0xff]
  %v227 = vld [vmem:[%s2 + $0x70] sm:$0xff]
  %v228 = vld [vmem:[%s2 + $0x78] sm:$0xff]
  %v229 = vld [vmem:[%s2 + $0x80] sm:$0xff]
  %v230 = vld [vmem:[%s2 + $0x88] sm:$0xff]
  %v231 = vld [vmem:[%s2 + $0x90] sm:$0xff]
  %v232 = vld [vmem:[%s2 + $0x98] sm:$0xff]
  %v233 = vld [vmem:[%s2 + $0xa0] sm:$0xff]
  %v234 = vld [vmem:[%s2 + $0xa8] sm:$0xff]
  %v235 = vld [vmem:[%s2 + $0xb0] sm:$0xff]
  %v236 = vld [vmem:[%s2 + $0xb8] sm:$0xff]
  %v237 = vld [vmem:[%s2 + $0xc0] sm:$0xff]
  %v238 = vld [vmem:[%s2 + $0xc8] sm:$0xff]
  %v239 = vld [vmem:[%s2 + $0xd0] sm:$0xff]
  %v240 = vld [vmem:[%s2 + $0xd8] sm:$0xff]
  %v241 = vld [vmem:[%s2 + $0xe0] sm:$0xff]
  %v242 = vld [vmem:[%s2 + $0xe8] sm:$0xff]
  %v243 = vld [vmem:[%s2 + $0xf0] sm:$0xff]
  %v244 = vld [vmem:[%s2 + $0xf8] sm:$0xff]
  %v245 = vld [vmem:[%s2 + $0x100] sm:$0xff]
  %v246 = vld [vmem:[%s2 + $0x108] sm:$0xff]
  %v247 = vld [vmem:[%s2 + $0x110] sm:$0xff]
  %v248 = vld [vmem:[%s2 + $0x118] sm:$0xff]
  %v249 = vld [vmem:[%s2 + $0x120] sm:$0xff]
  %v250 = vld [vmem:[%s2 + $0x128] sm:$0xff]
  %v251 = vld [vmem:[%s2 + $0x130] sm:$0xff]
  %v252 = vld [vmem:[%s2 + $0x138] sm:$0xff]
  %v253 = vld [vmem:[%s2 + $0x140] sm:$0xff]
  %v254 = vld [vmem:[%s2 + $0x148] sm:$0xff]
  %v255 = vld [vmem:[%s2 + $0x150] sm:$0xff]
  %v256 = vld [vmem:[%s2 + $0x158] sm:$0xff]
  %v257 = vld [vmem:[%s2 + $0x160] sm:$0xff]
  %v258 = vld [vmem:[%s2 + $0x168] sm:$0xff]
  %v259 = vld [vmem:[%s2 + $0x170] sm:$0xff]
  %v260 = vld [vmem:[%s2 + $0x178] sm:$0xff]
  %v261 = vld [vmem:[%s2 + $0x180] sm:$0xff]
  %v262 = vld [vmem:[%s2 + $0x188] sm:$0xff]
  %v263 = vld [vmem:[%s2 + $0x190] sm:$0xff]
  %v264 = vld [vmem:[%s2 + $0x198] sm:$0xff]
  %v265 = vld [vmem:[%s2 + $0x1a0] sm:$0xff]
  %v266 = vld [vmem:[%s2 + $0x1a8] sm:$0xff]
  %v267 = vld [vmem:[%s2 + $0x1b0] sm:$0xff]
  %v268 = vld [vmem:[%s2 + $0x1b8] sm:$0xff]
  %v269 = vld [vmem:[%s2 + $0x1c0] sm:$0xff]
  %v270 = vld [vmem:[%s2 + $0x1c8] sm:$0xff]
  %v271 = vld [vmem:[%s2 + $0x1d0] sm:$0xff]
  %v272 = vld [vmem:[%s2 + $0x1d8] sm:$0xff]
  %v273 = vld [vmem:[%s2 + $0x1e0] sm:$0xff]
  %v274 = vld [vmem:[%s2 + $0x1e8] sm:$0xff]
  %v275 = vld [vmem:[%s2 + $0x1f0] sm:$0xff]
  %v276 = vld [vmem:[%s2 + $0x1f8] sm:$0xff]
  %277 = vmatpush.msra.mxu0 %v212
  %278 = vmatpush.msra.mxu0 %v211
  %279 = vmatpush.msra.mxu0 %v210
  %280 = vmatpush.msra.mxu0 %v209
  %281 = vmatpush.msra.mxu0 %v208
  %282 = vmatpush.msra.mxu0 %v207
  %283 = vmatpush.msra.mxu0 %v206
  %284 = vmatpush.msra.mxu0 %v205
  %285 = vmatpush.msra.mxu0 %v204
  %286 = vmatpush.msra.mxu0 %v203
  %287 = vmatpush.msra.mxu0 %v202
  %288 = vmatpush.msra.mxu0 %v201
  %289 = vmatpush.msra.mxu0 %v200
  %290 = vmatpush.msra.mxu0 %v199
  %291 = vmatpush.msra.mxu0 %v198
  %292 = vmatpush.msra.mxu0 %v197
  %293 = vmatmul.f32.gmra.mxu0 %v213
  %v294 = vpop.f32.mrf.mxu0
  %v295 = vadd.f32 0.0, %v294
  %296 = vmatmul.f32.gmra.mxu0 %v214
  %v297 = vpop.f32.mrf.mxu0
  %v298 = vadd.f32 0.0, %v297
  %299 = vmatmul.f32.gmra.mxu0 %v215
  %v300 = vpop.f32.mrf.mxu0
  %v301 = vadd.f32 0.0, %v300
  %302 = vmatmul.f32.gmra.mxu0 %v216
  %v303 = vpop.f32.mrf.mxu0
  %v304 = vadd.f32 0.0, %v303
  %305 = vmatmul.f32.gmra.mxu0 %v217
  %v306 = vpop.f32.mrf.mxu0
  %v307 = vadd.f32 0.0, %v306
  %308 = vmatmul.f32.gmra.mxu0 %v218
  %v309 = vpop.f32.mrf.mxu0
  %v310 = vadd.f32 0.0, %v309
  %311 = vmatmul.f32.gmra.mxu0 %v219
  %v312 = vpop.f32.mrf.mxu0
  %v313 = vadd.f32 0.0, %v312
  %314 = vmatmul.f32.gmra.mxu0 %v220
  %v315 = vpop.f32.mrf.mxu0
  %v316 = vadd.f32 0.0, %v315
  %317 = vmatmul.f32.gmra.mxu0 %v221
  %v318 = vpop.f32.mrf.mxu0
  %v319 = vadd.f32 0.0, %v318
  %320 = vmatmul.f32.gmra.mxu0 %v222
  %v321 = vpop.f32.mrf.mxu0
  %v322 = vadd.f32 0.0, %v321
  %323 = vmatmul.f32.gmra.mxu0 %v223
  %v324 = vpop.f32.mrf.mxu0
  %v325 = vadd.f32 0.0, %v324
  %326 = vmatmul.f32.gmra.mxu0 %v224
  %v327 = vpop.f32.mrf.mxu0
  %v328 = vadd.f32 0.0, %v327
  %329 = vmatmul.f32.gmra.mxu0 %v225
  %v330 = vpop.f32.mrf.mxu0
  %v331 = vadd.f32 0.0, %v330
  %332 = vmatmul.f32.gmra.mxu0 %v226
  %v333 = vpop.f32.mrf.mxu0
  %v334 = vadd.f32 0.0, %v333
  %335 = vmatmul.f32.gmra.mxu0 %v227
  %v336 = vpop.f32.mrf.mxu0
  %v337 = vadd.f32 0.0, %v336
  %338 = vmatmul.f32.gmra.mxu0 %v228
  %v339 = vpop.f32.mrf.mxu0
  %v340 = vadd.f32 0.0, %v339
  %341 = vmatmul.f32.gmra.mxu0 %v229
  %v342 = vpop.f32.mrf.mxu0
  %v343 = vadd.f32 0.0, %v342
  %344 = vmatmul.f32.gmra.mxu0 %v230
  %v345 = vpop.f32.mrf.mxu0
  %v346 = vadd.f32 0.0, %v345
  %347 = vmatmul.f32.gmra.mxu0 %v231
  %v348 = vpop.f32.mrf.mxu0
  %v349 = vadd.f32 0.0, %v348
  %350 = vmatmul.f32.gmra.mxu0 %v232
  %v351 = vpop.f32.mrf.mxu0
  %v352 = vadd.f32 0.0, %v351
  %353 = vmatmul.f32.gmra.mxu0 %v233
  %v354 = vpop.f32.mrf.mxu0
  %v355 = vadd.f32 0.0, %v354
  %356 = vmatmul.f32.gmra.mxu0 %v234
  %v357 = vpop.f32.mrf.mxu0
  %v358 = vadd.f32 0.0, %v357
  %359 = vmatmul.f32.gmra.mxu0 %v235
  %v360 = vpop.f32.mrf.mxu0
  %v361 = vadd.f32 0.0, %v360
  %362 = vmatmul.f32.gmra.mxu0 %v236
  %v363 = vpop.f32.mrf.mxu0
  %v364 = vadd.f32 0.0, %v363
  %365 = vmatmul.f32.gmra.mxu0 %v237
  %v366 = vpop.f32.mrf.mxu0
  %v367 = vadd.f32 0.0, %v366
  %368 = vmatmul.f32.gmra.mxu0 %v238
  %v369 = vpop.f32.mrf.mxu0
  %v370 = vadd.f32 0.0, %v369
  %371 = vmatmul.f32.gmra.mxu0 %v239
  %v372 = vpop.f32.mrf.mxu0
  %v373 = vadd.f32 0.0, %v372
  %374 = vmatmul.f32.gmra.mxu0 %v240
  %v375 = vpop.f32.mrf.mxu0
  %v376 = vadd.f32 0.0, %v375
  %377 = vmatmul.f32.gmra.mxu0 %v241
  %v378 = vpop.f32.mrf.mxu0
  %v379 = vadd.f32 0.0, %v378
  %380 = vmatmul.f32.gmra.mxu0 %v242
  %v381 = vpop.f32.mrf.mxu0
  %v382 = vadd.f32 0.0, %v381
  %383 = vmatmul.f32.gmra.mxu0 %v243
  %v384 = vpop.f32.mrf.mxu0
  %v385 = vadd.f32 0.0, %v384
  %386 = vmatmul.f32.gmra.mxu0 %v244
  %v387 = vpop.f32.mrf.mxu0
  %v388 = vadd.f32 0.0, %v387
  %389 = vmatmul.f32.gmra.mxu0 %v245
  %v390 = vpop.f32.mrf.mxu0
  %v391 = vadd.f32 0.0, %v390
  %392 = vmatmul.f32.gmra.mxu0 %v246
  %v393 = vpop.f32.mrf.mxu0
  %v394 = vadd.f32 0.0, %v393
  %395 = vmatmul.f32.gmra.mxu0 %v247
  %v396 = vpop.f32.mrf.mxu0
  %v397 = vadd.f32 0.0, %v396
  %398 = vmatmul.f32.gmra.mxu0 %v248
  %v399 = vpop.f32.mrf.mxu0
  %v400 = vadd.f32 0.0, %v399
  %401 = vmatmul.f32.gmra.mxu0 %v249
  %v402 = vpop.f32.mrf.mxu0
  %v403 = vadd.f32 0.0, %v402
  %404 = vmatmul.f32.gmra.mxu0 %v250
  %v405 = vpop.f32.mrf.mxu0
  %v406 = vadd.f32 0.0, %v405
  %407 = vmatmul.f32.gmra.mxu0 %v251
  %v408 = vpop.f32.mrf.mxu0
  %v409 = vadd.f32 0.0, %v408
  %410 = vmatmul.f32.gmra.mxu0 %v252
  %v411 = vpop.f32.mrf.mxu0
  %v412 = vadd.f32 0.0, %v411
  %413 = vmatmul.f32.gmra.mxu0 %v253
  %v414 = vpop.f32.mrf.mxu0
  %v415 = vadd.f32 0.0, %v414
  %416 = vmatmul.f32.gmra.mxu0 %v254
  %v417 = vpop.f32.mrf.mxu0
  %v418 = vadd.f32 0.0, %v417
  %419 = vmatmul.f32.gmra.mxu0 %v255
  %v420 = vpop.f32.mrf.mxu0
  %v421 = vadd.f32 0.0, %v420
  %422 = vmatmul.f32.gmra.mxu0 %v256
  %v423 = vpop.f32.mrf.mxu0
  %v424 = vadd.f32 0.0, %v423
  %425 = vmatmul.f32.gmra.mxu0 %v257
  %v426 = vpop.f32.mrf.mxu0
  %v427 = vadd.f32 0.0, %v426
  %428 = vmatmul.f32.gmra.mxu0 %v258
  %v429 = vpop.f32.mrf.mxu0
  %v430 = vadd.f32 0.0, %v429
  %431 = vmatmul.f32.gmra.mxu0 %v259
  %v432 = vpop.f32.mrf.mxu0
  %v433 = vadd.f32 0.0, %v432
  %434 = vmatmul.f32.gmra.mxu0 %v260
  %v435 = vpop.f32.mrf.mxu0
  %v436 = vadd.f32 0.0, %v435
  %437 = vmatmul.f32.gmra.mxu0 %v261
  %v438 = vpop.f32.mrf.mxu0
  %v439 = vadd.f32 0.0, %v438
  %440 = vmatmul.f32.gmra.mxu0 %v262
  %v441 = vpop.f32.mrf.mxu0
  %v442 = vadd.f32 0.0, %v441
  %443 = vmatmul.f32.gmra.mxu0 %v263
  %v444 = vpop.f32.mrf.mxu0
  %v445 = vadd.f32 0.0, %v444
  %446 = vmatmul.f32.gmra.mxu0 %v264
  %v447 = vpop.f32.mrf.mxu0
  %v448 = vadd.f32 0.0, %v447
  %449 = vmatmul.f32.gmra.mxu0 %v265
  %v450 = vpop.f32.mrf.mxu0
  %v451 = vadd.f32 0.0, %v450
  %452 = vmatmul.f32.gmra.mxu0 %v266
  %v453 = vpop.f32.mrf.mxu0
  %v454 = vadd.f32 0.0, %v453
  %455 = vmatmul.f32.gmra.mxu0 %v267
  %v456 = vpop.f32.mrf.mxu0
  %v457 = vadd.f32 0.0, %v456
  %458 = vmatmul.f32.gmra.mxu0 %v268
  %v459 = vpop.f32.mrf.mxu0
  %v460 = vadd.f32 0.0, %v459
  %461 = vmatmul.f32.gmra.mxu0 %v269
  %v462 = vpop.f32.mrf.mxu0
  %v463 = vadd.f32 0.0, %v462
  %464 = vmatmul.f32.gmra.mxu0 %v270
  %v465 = vpop.f32.mrf.mxu0
  %v466 = vadd.f32 0.0, %v465
  %467 = vmatmul.f32.gmra.mxu0 %v271
  %v468 = vpop.f32.mrf.mxu0
  %v469 = vadd.f32 0.0, %v468
  %470 = vmatmul.f32.gmra.mxu0 %v272
  %v471 = vpop.f32.mrf.mxu0
  %v472 = vadd.f32 0.0, %v471
  %473 = vmatmul.f32.gmra.mxu0 %v273
  %v474 = vpop.f32.mrf.mxu0
  %v475 = vadd.f32 0.0, %v474
  %476 = vmatmul.f32.gmra.mxu0 %v274
  %v477 = vpop.f32.mrf.mxu0
  %v478 = vadd.f32 0.0, %v477
  %479 = vmatmul.f32.gmra.mxu0 %v275
  %v480 = vpop.f32.mrf.mxu0
  %v481 = vadd.f32 0.0, %v480
  %482 = vmatmul.f32.gmra.mxu0 %v276
  %v483 = vpop.f32.mrf.mxu0
  %v484 = vadd.f32 0.0, %v483
  %485 = vdwg.mxu0
  %v486 = vld [vmem:[%s3] sm:$0xff]
  %v487 = vld [vmem:[%s3 + $0x8] sm:$0xff]
  %v488 = vld [vmem:[%s3 + $0x10] sm:$0xff]
  %v489 = vld [vmem:[%s3 + $0x18] sm:$0xff]
  %vm490 = vcmask 130048
  %v492 = vsel %vm490, %v307, 0
  %v495 = vsel %vm490, %v310, 0
  %v498 = vsel %vm490, %v313, 0
  %v501 = vsel %vm490, %v316, 0
  %503 = vmatpush.msra.mxu0 0.0
  %504 = vmatpush.msra.mxu0 0.0
  %505 = vmatpush.msra.mxu0 0.0
  %506 = vmatpush.msra.mxu0 0.0
  %507 = vmatpush.msra.mxu0 0.0
  %508 = vmatpush.msra.mxu0 0.0
  %509 = vmatpush.msra.mxu0 0.0
  %510 = vmatpush.msra.mxu0 0.0
  %511 = vmatpush.msra.mxu0 0.0
  %512 = vmatpush.msra.mxu0 0.0
  %513 = vmatpush.msra.mxu0 0.0
  %514 = vmatpush.msra.mxu0 0.0
  %515 = vmatpush.msra.mxu0 0.0
  %516 = vmatpush.msra.mxu0 0.0
  %517 = vmatpush.msra.mxu0 %v489
  %518 = vmatpush.msra.mxu0 %v488
  %519 = vmatmul.f32.gmra.mxu0 %v492
  %v520 = vpop.f32.mrf.mxu0
  %v521 = vadd.f32 0.0, %v520
  %522 = vmatmul.f32.gmra.mxu0 %v495
  %v523 = vpop.f32.mrf.mxu0
  %v524 = vadd.f32 0.0, %v523
  %525 = vmatmul.f32.gmra.mxu0 %v498
  %v526 = vpop.f32.mrf.mxu0
  %v527 = vadd.f32 0.0, %v526
  %528 = vmatmul.f32.gmra.mxu0 %v501
  %v529 = vpop.f32.mrf.mxu0
  %v530 = vadd.f32 0.0, %v529
  %531 = vdwg.mxu0
  %v533 = vsel %vm490, %v295, 0
  %v536 = vsel %vm490, %v298, 0
  %v539 = vsel %vm490, %v301, 0
  %v542 = vsel %vm490, %v304, 0
  %544 = vmatpush.msra.mxu0 0.0
  %545 = vmatpush.msra.mxu0 0.0
  %546 = vmatpush.msra.mxu0 0.0
  %547 = vmatpush.msra.mxu0 0.0
  %548 = vmatpush.msra.mxu0 0.0
  %549 = vmatpush.msra.mxu0 0.0
  %550 = vmatpush.msra.mxu0 0.0
  %551 = vmatpush.msra.mxu0 0.0
  %552 = vmatpush.msra.mxu0 0.0
  %553 = vmatpush.msra.mxu0 0.0
  %554 = vmatpush.msra.mxu0 0.0
  %555 = vmatpush.msra.mxu0 0.0
  %556 = vmatpush.msra.mxu0 0.0
  %557 = vmatpush.msra.mxu0 0.0
  %558 = vmatpush.msra.mxu0 %v487
  %559 = vmatpush.msra.mxu0 %v486
  %560 = vmatmul.f32.gmra.mxu0 %v533
  %v561 = vpop.f32.mrf.mxu0
  %v562 = vadd.f32 %v521, %v561
  %563 = vmatmul.f32.gmra.mxu0 %v536
  %v564 = vpop.f32.mrf.mxu0
  %v565 = vadd.f32 %v524, %v564
  %566 = vmatmul.f32.gmra.mxu0 %v539
  %v567 = vpop.f32.mrf.mxu0
  %v568 = vadd.f32 %v527, %v567
  %569 = vmatmul.f32.gmra.mxu0 %v542
  %v570 = vpop.f32.mrf.mxu0
  %v571 = vadd.f32 %v530, %v570
  %572 = vdwg.mxu0
  %v573 = vld [vmem:[%s3 + $0x20] sm:$0xff]
  %v574 = vld [vmem:[%s3 + $0x28] sm:$0xff]
  %v576 = vsel %vm490, %v319, 0
  %v579 = vsel %vm490, %v322, 0
  %v582 = vsel %vm490, %v325, 0
  %v585 = vsel %vm490, %v328, 0
  %587 = vmatpush.msra.mxu0 0.0
  %588 = vmatpush.msra.mxu0 0.0
  %589 = vmatpush.msra.mxu0 0.0
  %590 = vmatpush.msra.mxu0 0.0
  %591 = vmatpush.msra.mxu0 0.0
  %592 = vmatpush.msra.mxu0 0.0
  %593 = vmatpush.msra.mxu0 0.0
  %594 = vmatpush.msra.mxu0 0.0
  %595 = vmatpush.msra.mxu0 0.0
  %596 = vmatpush.msra.mxu0 0.0
  %597 = vmatpush.msra.mxu0 0.0
  %598 = vmatpush.msra.mxu0 0.0
  %599 = vmatpush.msra.mxu0 0.0
  %600 = vmatpush.msra.mxu0 0.0
  %601 = vmatpush.msra.mxu0 %v574
  %602 = vmatpush.msra.mxu0 %v573
  %603 = vmatmul.f32.gmra.mxu0 %v576
  %v604 = vpop.f32.mrf.mxu0
  %v605 = vadd.f32 0.0, %v604
  %606 = vmatmul.f32.gmra.mxu0 %v579
  %v607 = vpop.f32.mrf.mxu0
  %v608 = vadd.f32 0.0, %v607
  %609 = vmatmul.f32.gmra.mxu0 %v582
  %v610 = vpop.f32.mrf.mxu0
  %v611 = vadd.f32 0.0, %v610
  %612 = vmatmul.f32.gmra.mxu0 %v585
  %v613 = vpop.f32.mrf.mxu0
  %v614 = vadd.f32 0.0, %v613
  %615 = vdwg.mxu0
  %v616 = vadd.f32 %v562, %v605
  %v617 = vadd.f32 %v565, %v608
  %v618 = vadd.f32 %v568, %v611
  %v619 = vadd.f32 %v571, %v614
  %v620 = vld [vmem:[%s3 + $0x30] sm:$0xff]
  %v621 = vld [vmem:[%s3 + $0x38] sm:$0xff]
  %v623 = vsel %vm490, %v331, 0
  %v626 = vsel %vm490, %v334, 0
  %v629 = vsel %vm490, %v337, 0
  %v632 = vsel %vm490, %v340, 0
  %634 = vmatpush.msra.mxu0 0.0
  %635 = vmatpush.msra.mxu0 0.0
  %636 = vmatpush.msra.mxu0 0.0
  %637 = vmatpush.msra.mxu0 0.0
  %638 = vmatpush.msra.mxu0 0.0
  %639 = vmatpush.msra.mxu0 0.0
  %640 = vmatpush.msra.mxu0 0.0
  %641 = vmatpush.msra.mxu0 0.0
  %642 = vmatpush.msra.mxu0 0.0
  %643 = vmatpush.msra.mxu0 0.0
  %644 = vmatpush.msra.mxu0 0.0
  %645 = vmatpush.msra.mxu0 0.0
  %646 = vmatpush.msra.mxu0 0.0
  %647 = vmatpush.msra.mxu0 0.0
  %648 = vmatpush.msra.mxu0 %v621
  %649 = vmatpush.msra.mxu0 %v620
  %650 = vmatmul.f32.gmra.mxu0 %v623
  %v651 = vpop.f32.mrf.mxu0
  %v652 = vadd.f32 0.0, %v651
  %653 = vmatmul.f32.gmra.mxu0 %v626
  %v654 = vpop.f32.mrf.mxu0
  %v655 = vadd.f32 0.0, %v654
  %656 = vmatmul.f32.gmra.mxu0 %v629
  %v657 = vpop.f32.mrf.mxu0
  %v658 = vadd.f32 0.0, %v657
  %659 = vmatmul.f32.gmra.mxu0 %v632
  %v660 = vpop.f32.mrf.mxu0
  %v661 = vadd.f32 0.0, %v660
  %662 = vdwg.mxu0
  %v663 = vadd.f32 %v616, %v652
  %v664 = vadd.f32 %v617, %v655
  %v665 = vadd.f32 %v618, %v658
  %v666 = vadd.f32 %v619, %v661
  %v667 = vld [vmem:[%s3 + $0x40] sm:$0xff]
  %v668 = vld [vmem:[%s3 + $0x48] sm:$0xff]
  %v670 = vsel %vm490, %v343, 0
  %v673 = vsel %vm490, %v346, 0
  %v676 = vsel %vm490, %v349, 0
  %v679 = vsel %vm490, %v352, 0
  %681 = vmatpush.msra.mxu0 0.0
  %682 = vmatpush.msra.mxu0 0.0
  %683 = vmatpush.msra.mxu0 0.0
  %684 = vmatpush.msra.mxu0 0.0
  %685 = vmatpush.msra.mxu0 0.0
  %686 = vmatpush.msra.mxu0 0.0
  %687 = vmatpush.msra.mxu0 0.0
  %688 = vmatpush.msra.mxu0 0.0
  %689 = vmatpush.msra.mxu0 0.0
  %690 = vmatpush.msra.mxu0 0.0
  %691 = vmatpush.msra.mxu0 0.0
  %692 = vmatpush.msra.mxu0 0.0
  %693 = vmatpush.msra.mxu0 0.0
  %694 = vmatpush.msra.mxu0 0.0
  %695 = vmatpush.msra.mxu0 %v668
  %696 = vmatpush.msra.mxu0 %v667
  %697 = vmatmul.f32.gmra.mxu0 %v670
  %v698 = vpop.f32.mrf.mxu0
  %v699 = vadd.f32 0.0, %v698
  %700 = vmatmul.f32.gmra.mxu0 %v673
  %v701 = vpop.f32.mrf.mxu0
  %v702 = vadd.f32 0.0, %v701
  %703 = vmatmul.f32.gmra.mxu0 %v676
  %v704 = vpop.f32.mrf.mxu0
  %v705 = vadd.f32 0.0, %v704
  %706 = vmatmul.f32.gmra.mxu0 %v679
  %v707 = vpop.f32.mrf.mxu0
  %v708 = vadd.f32 0.0, %v707
  %709 = vdwg.mxu0
  %v710 = vadd.f32 %v663, %v699
  %v711 = vadd.f32 %v664, %v702
  %v712 = vadd.f32 %v665, %v705
  %v713 = vadd.f32 %v666, %v708
  %v714 = vld [vmem:[%s3 + $0x50] sm:$0xff]
  %v715 = vld [vmem:[%s3 + $0x58] sm:$0xff]
  %v717 = vsel %vm490, %v355, 0
  %v720 = vsel %vm490, %v358, 0
  %v723 = vsel %vm490, %v361, 0
  %v726 = vsel %vm490, %v364, 0
  %728 = vmatpush.msra.mxu0 0.0
  %729 = vmatpush.msra.mxu0 0.0
  %730 = vmatpush.msra.mxu0 0.0
  %731 = vmatpush.msra.mxu0 0.0
  %732 = vmatpush.msra.mxu0 0.0
  %733 = vmatpush.msra.mxu0 0.0
  %734 = vmatpush.msra.mxu0 0.0
  %735 = vmatpush.msra.mxu0 0.0
  %736 = vmatpush.msra.mxu0 0.0
  %737 = vmatpush.msra.mxu0 0.0
  %738 = vmatpush.msra.mxu0 0.0
  %739 = vmatpush.msra.mxu0 0.0
  %740 = vmatpush.msra.mxu0 0.0
  %741 = vmatpush.msra.mxu0 0.0
  %742 = vmatpush.msra.mxu0 %v715
  %743 = vmatpush.msra.mxu0 %v714
  %744 = vmatmul.f32.gmra.mxu0 %v717
  %v745 = vpop.f32.mrf.mxu0
  %v746 = vadd.f32 0.0, %v745
  %747 = vmatmul.f32.gmra.mxu0 %v720
  %v748 = vpop.f32.mrf.mxu0
  %v749 = vadd.f32 0.0, %v748
  %750 = vmatmul.f32.gmra.mxu0 %v723
  %v751 = vpop.f32.mrf.mxu0
  %v752 = vadd.f32 0.0, %v751
  %753 = vmatmul.f32.gmra.mxu0 %v726
  %v754 = vpop.f32.mrf.mxu0
  %v755 = vadd.f32 0.0, %v754
  %756 = vdwg.mxu0
  %v757 = vadd.f32 %v710, %v746
  %v758 = vadd.f32 %v711, %v749
  %v759 = vadd.f32 %v712, %v752
  %v760 = vadd.f32 %v713, %v755
  %v761 = vld [vmem:[%s3 + $0x60] sm:$0xff]
  %v762 = vld [vmem:[%s3 + $0x68] sm:$0xff]
  %v764 = vsel %vm490, %v367, 0
  %v767 = vsel %vm490, %v370, 0
  %v770 = vsel %vm490, %v373, 0
  %v773 = vsel %vm490, %v376, 0
  %775 = vmatpush.msra.mxu0 0.0
  %776 = vmatpush.msra.mxu0 0.0
  %777 = vmatpush.msra.mxu0 0.0
  %778 = vmatpush.msra.mxu0 0.0
  %779 = vmatpush.msra.mxu0 0.0
  %780 = vmatpush.msra.mxu0 0.0
  %781 = vmatpush.msra.mxu0 0.0
  %782 = vmatpush.msra.mxu0 0.0
  %783 = vmatpush.msra.mxu0 0.0
  %784 = vmatpush.msra.mxu0 0.0
  %785 = vmatpush.msra.mxu0 0.0
  %786 = vmatpush.msra.mxu0 0.0
  %787 = vmatpush.msra.mxu0 0.0
  %788 = vmatpush.msra.mxu0 0.0
  %789 = vmatpush.msra.mxu0 %v762
  %790 = vmatpush.msra.mxu0 %v761
  %791 = vmatmul.f32.gmra.mxu0 %v764
  %v792 = vpop.f32.mrf.mxu0
  %v793 = vadd.f32 0.0, %v792
  %794 = vmatmul.f32.gmra.mxu0 %v767
  %v795 = vpop.f32.mrf.mxu0
  %v796 = vadd.f32 0.0, %v795
  %797 = vmatmul.f32.gmra.mxu0 %v770
  %v798 = vpop.f32.mrf.mxu0
  %v799 = vadd.f32 0.0, %v798
  %800 = vmatmul.f32.gmra.mxu0 %v773
  %v801 = vpop.f32.mrf.mxu0
  %v802 = vadd.f32 0.0, %v801
  %803 = vdwg.mxu0
  %v804 = vadd.f32 %v757, %v793
  %v805 = vadd.f32 %v758, %v796
  %v806 = vadd.f32 %v759, %v799
  %v807 = vadd.f32 %v760, %v802
  %v808 = vld [vmem:[%s3 + $0x70] sm:$0xff]
  %v809 = vld [vmem:[%s3 + $0x78] sm:$0xff]
  %v811 = vsel %vm490, %v379, 0
  %v814 = vsel %vm490, %v382, 0
  %v817 = vsel %vm490, %v385, 0
  %v820 = vsel %vm490, %v388, 0
  %822 = vmatpush.msra.mxu0 0.0
  %823 = vmatpush.msra.mxu0 0.0
  %824 = vmatpush.msra.mxu0 0.0
  %825 = vmatpush.msra.mxu0 0.0
  %826 = vmatpush.msra.mxu0 0.0
  %827 = vmatpush.msra.mxu0 0.0
  %828 = vmatpush.msra.mxu0 0.0
  %829 = vmatpush.msra.mxu0 0.0
  %830 = vmatpush.msra.mxu0 0.0
  %831 = vmatpush.msra.mxu0 0.0
  %832 = vmatpush.msra.mxu0 0.0
  %833 = vmatpush.msra.mxu0 0.0
  %834 = vmatpush.msra.mxu0 0.0
  %835 = vmatpush.msra.mxu0 0.0
  %836 = vmatpush.msra.mxu0 %v809
  %837 = vmatpush.msra.mxu0 %v808
  %838 = vmatmul.f32.gmra.mxu0 %v811
  %v839 = vpop.f32.mrf.mxu0
  %v840 = vadd.f32 0.0, %v839
  %841 = vmatmul.f32.gmra.mxu0 %v814
  %v842 = vpop.f32.mrf.mxu0
  %v843 = vadd.f32 0.0, %v842
  %844 = vmatmul.f32.gmra.mxu0 %v817
  %v845 = vpop.f32.mrf.mxu0
  %v846 = vadd.f32 0.0, %v845
  %847 = vmatmul.f32.gmra.mxu0 %v820
  %v848 = vpop.f32.mrf.mxu0
  %v849 = vadd.f32 0.0, %v848
  %850 = vdwg.mxu0
  %v851 = vadd.f32 %v804, %v840
  %v852 = vadd.f32 %v805, %v843
  %v853 = vadd.f32 %v806, %v846
  %v854 = vadd.f32 %v807, %v849
  %v855 = vld [vmem:[%s3 + $0x80] sm:$0xff]
  %v856 = vld [vmem:[%s3 + $0x88] sm:$0xff]
  %v858 = vsel %vm490, %v391, 0
  %v861 = vsel %vm490, %v394, 0
  %v864 = vsel %vm490, %v397, 0
  %v867 = vsel %vm490, %v400, 0
  %869 = vmatpush.msra.mxu0 0.0
  %870 = vmatpush.msra.mxu0 0.0
  %871 = vmatpush.msra.mxu0 0.0
  %872 = vmatpush.msra.mxu0 0.0
  %873 = vmatpush.msra.mxu0 0.0
  %874 = vmatpush.msra.mxu0 0.0
  %875 = vmatpush.msra.mxu0 0.0
  %876 = vmatpush.msra.mxu0 0.0
  %877 = vmatpush.msra.mxu0 0.0
  %878 = vmatpush.msra.mxu0 0.0
  %879 = vmatpush.msra.mxu0 0.0
  %880 = vmatpush.msra.mxu0 0.0
  %881 = vmatpush.msra.mxu0 0.0
  %882 = vmatpush.msra.mxu0 0.0
  %883 = vmatpush.msra.mxu0 %v856
  %884 = vmatpush.msra.mxu0 %v855
  %885 = vmatmul.f32.gmra.mxu0 %v858
  %v886 = vpop.f32.mrf.mxu0
  %v887 = vadd.f32 0.0, %v886
  %888 = vmatmul.f32.gmra.mxu0 %v861
  %v889 = vpop.f32.mrf.mxu0
  %v890 = vadd.f32 0.0, %v889
  %891 = vmatmul.f32.gmra.mxu0 %v864
  %v892 = vpop.f32.mrf.mxu0
  %v893 = vadd.f32 0.0, %v892
  %894 = vmatmul.f32.gmra.mxu0 %v867
  %v895 = vpop.f32.mrf.mxu0
  %v896 = vadd.f32 0.0, %v895
  %897 = vdwg.mxu0
  %v898 = vadd.f32 %v851, %v887
  %v899 = vadd.f32 %v852, %v890
  %v900 = vadd.f32 %v853, %v893
  %v901 = vadd.f32 %v854, %v896
  %v902 = vld [vmem:[%s3 + $0x90] sm:$0xff]
  %v903 = vld [vmem:[%s3 + $0x98] sm:$0xff]
  %v905 = vsel %vm490, %v403, 0
  %v908 = vsel %vm490, %v406, 0
  %v911 = vsel %vm490, %v409, 0
  %v914 = vsel %vm490, %v412, 0
  %916 = vmatpush.msra.mxu0 0.0
  %917 = vmatpush.msra.mxu0 0.0
  %918 = vmatpush.msra.mxu0 0.0
  %919 = vmatpush.msra.mxu0 0.0
  %920 = vmatpush.msra.mxu0 0.0
  %921 = vmatpush.msra.mxu0 0.0
  %922 = vmatpush.msra.mxu0 0.0
  %923 = vmatpush.msra.mxu0 0.0
  %924 = vmatpush.msra.mxu0 0.0
  %925 = vmatpush.msra.mxu0 0.0
  %926 = vmatpush.msra.mxu0 0.0
  %927 = vmatpush.msra.mxu0 0.0
  %928 = vmatpush.msra.mxu0 0.0
  %929 = vmatpush.msra.mxu0 0.0
  %930 = vmatpush.msra.mxu0 %v903
  %931 = vmatpush.msra.mxu0 %v902
  %932 = vmatmul.f32.gmra.mxu0 %v905
  %v933 = vpop.f32.mrf.mxu0
  %v934 = vadd.f32 0.0, %v933
  %935 = vmatmul.f32.gmra.mxu0 %v908
  %v936 = vpop.f32.mrf.mxu0
  %v937 = vadd.f32 0.0, %v936
  %938 = vmatmul.f32.gmra.mxu0 %v911
  %v939 = vpop.f32.mrf.mxu0
  %v940 = vadd.f32 0.0, %v939
  %941 = vmatmul.f32.gmra.mxu0 %v914
  %v942 = vpop.f32.mrf.mxu0
  %v943 = vadd.f32 0.0, %v942
  %944 = vdwg.mxu0
  %v945 = vadd.f32 %v898, %v934
  %v946 = vadd.f32 %v899, %v937
  %v947 = vadd.f32 %v900, %v940
  %v948 = vadd.f32 %v901, %v943
  %v949 = vld [vmem:[%s3 + $0xa0] sm:$0xff]
  %v950 = vld [vmem:[%s3 + $0xa8] sm:$0xff]
  %v952 = vsel %vm490, %v415, 0
  %v955 = vsel %vm490, %v418, 0
  %v958 = vsel %vm490, %v421, 0
  %v961 = vsel %vm490, %v424, 0
  %963 = vmatpush.msra.mxu0 0.0
  %964 = vmatpush.msra.mxu0 0.0
  %965 = vmatpush.msra.mxu0 0.0
  %966 = vmatpush.msra.mxu0 0.0
  %967 = vmatpush.msra.mxu0 0.0
  %968 = vmatpush.msra.mxu0 0.0
  %969 = vmatpush.msra.mxu0 0.0
  %970 = vmatpush.msra.mxu0 0.0
  %971 = vmatpush.msra.mxu0 0.0
  %972 = vmatpush.msra.mxu0 0.0
  %973 = vmatpush.msra.mxu0 0.0
  %974 = vmatpush.msra.mxu0 0.0
  %975 = vmatpush.msra.mxu0 0.0
  %976 = vmatpush.msra.mxu0 0.0
  %977 = vmatpush.msra.mxu0 %v950
  %978 = vmatpush.msra.mxu0 %v949
  %979 = vmatmul.f32.gmra.mxu0 %v952
  %v980 = vpop.f32.mrf.mxu0
  %v981 = vadd.f32 0.0, %v980
  %982 = vmatmul.f32.gmra.mxu0 %v955
  %v983 = vpop.f32.mrf.mxu0
  %v984 = vadd.f32 0.0, %v983
  %985 = vmatmul.f32.gmra.mxu0 %v958
  %v986 = vpop.f32.mrf.mxu0
  %v987 = vadd.f32 0.0, %v986
  %988 = vmatmul.f32.gmra.mxu0 %v961
  %v989 = vpop.f32.mrf.mxu0
  %v990 = vadd.f32 0.0, %v989
  %991 = vdwg.mxu0
  %v992 = vadd.f32 %v945, %v981
  %v993 = vadd.f32 %v946, %v984
  %v994 = vadd.f32 %v947, %v987
  %v995 = vadd.f32 %v948, %v990
  %v996 = vld [vmem:[%s3 + $0xb0] sm:$0xff]
  %v997 = vld [vmem:[%s3 + $0xb8] sm:$0xff]
  %v999 = vsel %vm490, %v427, 0
  %v1002 = vsel %vm490, %v430, 0
  %v1005 = vsel %vm490, %v433, 0
  %v1008 = vsel %vm490, %v436, 0
  %1010 = vmatpush.msra.mxu0 0.0
  %1011 = vmatpush.msra.mxu0 0.0
  %1012 = vmatpush.msra.mxu0 0.0
  %1013 = vmatpush.msra.mxu0 0.0
  %1014 = vmatpush.msra.mxu0 0.0
  %1015 = vmatpush.msra.mxu0 0.0
  %1016 = vmatpush.msra.mxu0 0.0
  %1017 = vmatpush.msra.mxu0 0.0
  %1018 = vmatpush.msra.mxu0 0.0
  %1019 = vmatpush.msra.mxu0 0.0
  %1020 = vmatpush.msra.mxu0 0.0
  %1021 = vmatpush.msra.mxu0 0.0
  %1022 = vmatpush.msra.mxu0 0.0
  %1023 = vmatpush.msra.mxu0 0.0
  %1024 = vmatpush.msra.mxu0 %v997
  %1025 = vmatpush.msra.mxu0 %v996
  %1026 = vmatmul.f32.gmra.mxu0 %v999
  %v1027 = vpop.f32.mrf.mxu0
  %v1028 = vadd.f32 0.0, %v1027
  %1029 = vmatmul.f32.gmra.mxu0 %v1002
  %v1030 = vpop.f32.mrf.mxu0
  %v1031 = vadd.f32 0.0, %v1030
  %1032 = vmatmul.f32.gmra.mxu0 %v1005
  %v1033 = vpop.f32.mrf.mxu0
  %v1034 = vadd.f32 0.0, %v1033
  %1035 = vmatmul.f32.gmra.mxu0 %v1008
  %v1036 = vpop.f32.mrf.mxu0
  %v1037 = vadd.f32 0.0, %v1036
  %1038 = vdwg.mxu0
  %v1039 = vadd.f32 %v992, %v1028
  %v1040 = vadd.f32 %v993, %v1031
  %v1041 = vadd.f32 %v994, %v1034
  %v1042 = vadd.f32 %v995, %v1037
  %v1043 = vld [vmem:[%s3 + $0xc0] sm:$0xff]
  %v1044 = vld [vmem:[%s3 + $0xc8] sm:$0xff]
  %v1046 = vsel %vm490, %v439, 0
  %v1049 = vsel %vm490, %v442, 0
  %v1052 = vsel %vm490, %v445, 0
  %v1055 = vsel %vm490, %v448, 0
  %1057 = vmatpush.msra.mxu0 0.0
  %1058 = vmatpush.msra.mxu0 0.0
  %1059 = vmatpush.msra.mxu0 0.0
  %1060 = vmatpush.msra.mxu0 0.0
  %1061 = vmatpush.msra.mxu0 0.0
  %1062 = vmatpush.msra.mxu0 0.0
  %1063 = vmatpush.msra.mxu0 0.0
  %1064 = vmatpush.msra.mxu0 0.0
  %1065 = vmatpush.msra.mxu0 0.0
  %1066 = vmatpush.msra.mxu0 0.0
  %1067 = vmatpush.msra.mxu0 0.0
  %1068 = vmatpush.msra.mxu0 0.0
  %1069 = vmatpush.msra.mxu0 0.0
  %1070 = vmatpush.msra.mxu0 0.0
  %1071 = vmatpush.msra.mxu0 %v1044
  %1072 = vmatpush.msra.mxu0 %v1043
  %1073 = vmatmul.f32.gmra.mxu0 %v1046
  %v1074 = vpop.f32.mrf.mxu0
  %v1075 = vadd.f32 0.0, %v1074
  %1076 = vmatmul.f32.gmra.mxu0 %v1049
  %v1077 = vpop.f32.mrf.mxu0
  %v1078 = vadd.f32 0.0, %v1077
  %1079 = vmatmul.f32.gmra.mxu0 %v1052
  %v1080 = vpop.f32.mrf.mxu0
  %v1081 = vadd.f32 0.0, %v1080
  %1082 = vmatmul.f32.gmra.mxu0 %v1055
  %v1083 = vpop.f32.mrf.mxu0
  %v1084 = vadd.f32 0.0, %v1083
  %1085 = vdwg.mxu0
  %v1086 = vadd.f32 %v1039, %v1075
  %v1087 = vadd.f32 %v1040, %v1078
  %v1088 = vadd.f32 %v1041, %v1081
  %v1089 = vadd.f32 %v1042, %v1084
  %v1090 = vld [vmem:[%s3 + $0xd0] sm:$0xff]
  %v1091 = vld [vmem:[%s3 + $0xd8] sm:$0xff]
  %v1093 = vsel %vm490, %v451, 0
  %v1096 = vsel %vm490, %v454, 0
  %v1099 = vsel %vm490, %v457, 0
  %v1102 = vsel %vm490, %v460, 0
  %1104 = vmatpush.msra.mxu0 0.0
  %1105 = vmatpush.msra.mxu0 0.0
  %1106 = vmatpush.msra.mxu0 0.0
  %1107 = vmatpush.msra.mxu0 0.0
  %1108 = vmatpush.msra.mxu0 0.0
  %1109 = vmatpush.msra.mxu0 0.0
  %1110 = vmatpush.msra.mxu0 0.0
  %1111 = vmatpush.msra.mxu0 0.0
  %1112 = vmatpush.msra.mxu0 0.0
  %1113 = vmatpush.msra.mxu0 0.0
  %1114 = vmatpush.msra.mxu0 0.0
  %1115 = vmatpush.msra.mxu0 0.0
  %1116 = vmatpush.msra.mxu0 0.0
  %1117 = vmatpush.msra.mxu0 0.0
  %1118 = vmatpush.msra.mxu0 %v1091
  %1119 = vmatpush.msra.mxu0 %v1090
  %1120 = vmatmul.f32.gmra.mxu0 %v1093
  %v1121 = vpop.f32.mrf.mxu0
  %v1122 = vadd.f32 0.0, %v1121
  %1123 = vmatmul.f32.gmra.mxu0 %v1096
  %v1124 = vpop.f32.mrf.mxu0
  %v1125 = vadd.f32 0.0, %v1124
  %1126 = vmatmul.f32.gmra.mxu0 %v1099
  %v1127 = vpop.f32.mrf.mxu0
  %v1128 = vadd.f32 0.0, %v1127
  %1129 = vmatmul.f32.gmra.mxu0 %v1102
  %v1130 = vpop.f32.mrf.mxu0
  %v1131 = vadd.f32 0.0, %v1130
  %1132 = vdwg.mxu0
  %v1133 = vadd.f32 %v1086, %v1122
  %v1134 = vadd.f32 %v1087, %v1125
  %v1135 = vadd.f32 %v1088, %v1128
  %v1136 = vadd.f32 %v1089, %v1131
  %v1137 = vld [vmem:[%s3 + $0xe0] sm:$0xff]
  %v1138 = vld [vmem:[%s3 + $0xe8] sm:$0xff]
  %v1140 = vsel %vm490, %v463, 0
  %v1143 = vsel %vm490, %v466, 0
  %v1146 = vsel %vm490, %v469, 0
  %v1149 = vsel %vm490, %v472, 0
  %1151 = vmatpush.msra.mxu0 0.0
  %1152 = vmatpush.msra.mxu0 0.0
  %1153 = vmatpush.msra.mxu0 0.0
  %1154 = vmatpush.msra.mxu0 0.0
  %1155 = vmatpush.msra.mxu0 0.0
  %1156 = vmatpush.msra.mxu0 0.0
  %1157 = vmatpush.msra.mxu0 0.0
  %1158 = vmatpush.msra.mxu0 0.0
  %1159 = vmatpush.msra.mxu0 0.0
  %1160 = vmatpush.msra.mxu0 0.0
  %1161 = vmatpush.msra.mxu0 0.0
  %1162 = vmatpush.msra.mxu0 0.0
  %1163 = vmatpush.msra.mxu0 0.0
  %1164 = vmatpush.msra.mxu0 0.0
  %1165 = vmatpush.msra.mxu0 %v1138
  %1166 = vmatpush.msra.mxu0 %v1137
  %1167 = vmatmul.f32.gmra.mxu0 %v1140
  %v1168 = vpop.f32.mrf.mxu0
  %v1169 = vadd.f32 0.0, %v1168
  %1170 = vmatmul.f32.gmra.mxu0 %v1143
  %v1171 = vpop.f32.mrf.mxu0
  %v1172 = vadd.f32 0.0, %v1171
  %1173 = vmatmul.f32.gmra.mxu0 %v1146
  %v1174 = vpop.f32.mrf.mxu0
  %v1175 = vadd.f32 0.0, %v1174
  %1176 = vmatmul.f32.gmra.mxu0 %v1149
  %v1177 = vpop.f32.mrf.mxu0
  %v1178 = vadd.f32 0.0, %v1177
  %1179 = vdwg.mxu0
  %v1180 = vadd.f32 %v1133, %v1169
  %v1181 = vadd.f32 %v1134, %v1172
  %v1182 = vadd.f32 %v1135, %v1175
  %v1183 = vadd.f32 %v1136, %v1178
  %v1184 = vld [vmem:[%s3 + $0xf0] sm:$0xff]
  %v1185 = vld [vmem:[%s3 + $0xf8] sm:$0xff]
  %v1187 = vsel %vm490, %v475, 0
  %v1190 = vsel %vm490, %v478, 0
  %v1193 = vsel %vm490, %v481, 0
  %v1196 = vsel %vm490, %v484, 0
  %1198 = vmatpush.msra.mxu0 0.0
  %1199 = vmatpush.msra.mxu0 0.0
  %1200 = vmatpush.msra.mxu0 0.0
  %1201 = vmatpush.msra.mxu0 0.0
  %1202 = vmatpush.msra.mxu0 0.0
  %1203 = vmatpush.msra.mxu0 0.0
  %1204 = vmatpush.msra.mxu0 0.0
  %1205 = vmatpush.msra.mxu0 0.0
  %1206 = vmatpush.msra.mxu0 0.0
  %1207 = vmatpush.msra.mxu0 0.0
  %1208 = vmatpush.msra.mxu0 0.0
  %1209 = vmatpush.msra.mxu0 0.0
  %1210 = vmatpush.msra.mxu0 0.0
  %1211 = vmatpush.msra.mxu0 0.0
  %1212 = vmatpush.msra.mxu0 %v1185
  %1213 = vmatpush.msra.mxu0 %v1184
  %1214 = vmatmul.f32.gmra.mxu0 %v1187
  %v1215 = vpop.f32.mrf.mxu0
  %v1216 = vadd.f32 0.0, %v1215
  %1217 = vmatmul.f32.gmra.mxu0 %v1190
  %v1218 = vpop.f32.mrf.mxu0
  %v1219 = vadd.f32 0.0, %v1218
  %1220 = vmatmul.f32.gmra.mxu0 %v1193
  %v1221 = vpop.f32.mrf.mxu0
  %v1222 = vadd.f32 0.0, %v1221
  %1223 = vmatmul.f32.gmra.mxu0 %v1196
  %v1224 = vpop.f32.mrf.mxu0
  %v1225 = vadd.f32 0.0, %v1224
  %1226 = vdwg.mxu0
  %v1227 = vadd.f32 %v1180, %v1216
  %v1228 = vadd.f32 %v1181, %v1219
  %v1229 = vadd.f32 %v1182, %v1222
  %v1230 = vadd.f32 %v1183, %v1225
  %vm1231 = vcmask 261120
  %v1232 = vsel %vm1231, %v1227, 0.0
  %v1233 = vsel %vm1231, %v1228, 0.0
  %v1234 = vadd.f32 %v1232, %v1233
  %v1235 = vsel %vm1231, %v1229, 0.0
  %v1236 = vadd.f32 %v1234, %v1235
  %v1237 = vsel %vm1231, %v1230, 0.0
  %v1238 = vadd.f32 %v1236, %v1237
  %v1239 = vrot.slane %v1238, 4
  %v1240 = vadd.f32 %v1238, %v1239
  %v1241 = vrot.slane %v1240, 2
  %v1242 = vadd.f32 %v1240, %v1241
  %v1243 = vrot.slane %v1242, 1
  %v1244 = vadd.f32 %v1242, %v1243
  %v1245 = vrcp.pop 32.0
  %v1246 = vmul.f32 32.0, %v1245
  %v1247 = vsub.f32 1.0, %v1246
  %v1248 = vmul.f32 %v1245, %v1247
  %v1249 = vadd.f32 %v1245, %v1248
  %vm1250 = vweird.f32 %v1245
  %v1251 = vsel %vm1250, %v1245, %v1249
  %v1252 = vmul.f32 %v1244, %v1251
  %v1253 = vsub.f32 %v1227, %v1252
  %v1254 = vsub.f32 %v1228, %v1252
  %v1255 = vsub.f32 %v1229, %v1252
  %v1256 = vsub.f32 %v1230, %v1252
  %v1257 = vmul.f32 %v1253, %v1253
  %v1258 = vmul.f32 %v1254, %v1254
  %v1259 = vmul.f32 %v1255, %v1255
  %v1260 = vmul.f32 %v1256, %v1256
  %v1261 = vsel %vm1231, %v1257, 0.0
  %v1262 = vsel %vm1231, %v1258, 0.0
  %v1263 = vadd.f32 %v1261, %v1262
  %v1264 = vsel %vm1231, %v1259, 0.0
  %v1265 = vadd.f32 %v1263, %v1264
  %v1266 = vsel %vm1231, %v1260, 0.0
  %v1267 = vadd.f32 %v1265, %v1266
  %v1268 = vrot.slane %v1267, 4
  %v1269 = vadd.f32 %v1267, %v1268
  %v1270 = vrot.slane %v1269, 2
  %v1271 = vadd.f32 %v1269, %v1270
  %v1272 = vrot.slane %v1271, 1
  %v1273 = vadd.f32 %v1271, %v1272
  %v1274 = vmul.f32 %v1273, %v1251
  %v1275 = vadd.f32 %v1274, 1e-05
  %v1276 = vrsqrt.pop %v1275
  %v1277 = vmul.f32 %v1276, %v1275
  %v1278 = vmul.f32 %v1277, %v1276
  %v1279 = vmul.f32 0.5, %v1278
  %v1280 = vsub.f32 1.5, %v1279
  %v1281 = vmul.f32 %v1276, %v1280
  %vm1282 = vweird.f32 %v1275
  %vm1283 = vweird.f32 %v1276
  %vm1284 = vmor %vm1282, %vm1283
  %v1285 = vsel %vm1284, %v1276, %v1281
  %v1286 = vmul.f32 %v1253, %v1285
  %v1287 = vmul.f32 %v1254, %v1285
  %v1288 = vmul.f32 %v1255, %v1285
  %v1289 = vmul.f32 %v1256, %v1285
  %v1290 = vld [vmem:[%s4] sm:$0x1]
  %v1292 = vperm.slane %v1290, 0
  %v1294 = vmul.f32 %v1286, %v1292
  %v1295 = vmul.f32 %v1287, %v1292
  %v1296 = vmul.f32 %v1288, %v1292
  %v1297 = vmul.f32 %v1289, %v1292
  %v1298 = vld [vmem:[%s5] sm:$0x1]
  %v1300 = vperm.slane %v1298, 0
  %v1302 = vadd.f32 %v1294, %v1300
  %v1303 = vadd.f32 %v1295, %v1300
  %v1304 = vadd.f32 %v1296, %v1300
  %v1305 = vadd.f32 %v1297, %v1300
  %vm1306 = vcmp.gt.f32.partialorder %v1302, 0.0
  %vm1307 = vcmp.gt.f32.partialorder %v1303, 0.0
  %vm1308 = vcmp.gt.f32.partialorder %v1304, 0.0
  %vm1309 = vcmp.gt.f32.partialorder %v1305, 0.0
  %v1310 = vmul.f32 %v1302, 0.2
  %v1311 = vmul.f32 %v1303, 0.2
  %v1312 = vmul.f32 %v1304, 0.2
  %v1313 = vmul.f32 %v1305, 0.2
  %v1314 = vsel %vm1306, %v1302, %v1310
  %v1315 = vsel %vm1307, %v1303, %v1311
  %v1316 = vsel %vm1308, %v1304, %v1312
  %v1317 = vsel %vm1309, %v1305, %v1313
  %v1318 = vld [vmem:[%s6] sm:$0xff]
  %v1319 = vld [vmem:[%s6 + $0x8] sm:$0xff]
  %v1320 = vld [vmem:[%s6 + $0x10] sm:$0xff]
  %v1321 = vld [vmem:[%s6 + $0x18] sm:$0xff]
  %v1322 = vmul.f32 %v1314, %v1318
  %v1323 = vmul.f32 %v1315, %v1319
  %v1324 = vmul.f32 %v1316, %v1320
  %v1325 = vmul.f32 %v1317, %v1321
  %v1326 = vld [vmem:[%s7] sm:$0xff]
  %v1328 = vsel %vm1231, %v1326, 0
  %1330 = vmatpush.msra.mxu0 0.0
  %1331 = vmatpush.msra.mxu0 0.0
  %1332 = vmatpush.msra.mxu0 0.0
  %1333 = vmatpush.msra.mxu0 0.0
  %1334 = vmatpush.msra.mxu0 0.0
  %1335 = vmatpush.msra.mxu0 0.0
  %1336 = vmatpush.msra.mxu0 0.0
  %1337 = vmatpush.msra.mxu0 0.0
  %1338 = vmatpush.msra.mxu0 0.0
  %1339 = vmatpush.msra.mxu0 0.0
  %1340 = vmatpush.msra.mxu0 0.0
  %1341 = vmatpush.msra.mxu0 0.0
  %1342 = vmatpush.msra.mxu0 %v1325
  %1343 = vmatpush.msra.mxu0 %v1324
  %1344 = vmatpush.msra.mxu0 %v1323
  %1345 = vmatpush.msra.mxu0 %v1322
  %1346 = vmatmul.f32.gmra.mxu0 %v1328
  %v1347 = vpop.f32.mrf.mxu0
  %v1348 = vadd.f32 0.0, %v1347
  %1349 = vdwg.mxu0
  %v1350 = vsel %vm1231, %v1348, 0.0
  %1351 = vadd.xlane.f32.xlu0 %v1350
  %v1352 = vpop.xlane.xlu0 %1351
  %v1353 = vxor.u32 %v1352, 2147483648
  %v1354 = vmul.f32 %v1353, 1.442695
  %v1355 = vpow.pop %v1354
  %v1356 = vadd.f32 %v1355, 1.0
  %v1357 = vrcp.pop %v1356
  %v1358 = vmul.f32 %v1356, %v1357
  %v1359 = vsub.f32 1.0, %v1358
  %v1360 = vmul.f32 %v1357, %v1359
  %v1361 = vadd.f32 %v1357, %v1360
  %vm1362 = vweird.f32 %v1356
  %vm1363 = vweird.f32 %v1357
  %vm1364 = vmor %vm1362, %vm1363
  %v1365 = vsel %vm1364, %v1357, %v1361
  %v1366 = vand.u32 2147483647, %v1356
  %vm1367 = vcmp.eq.f32.partialorder %v1366, 8.507059e+37
  %v1368 = vand.u32 %v1356, 2147483648
  %v1369 = vor.u32 1.1754944e-38, %v1368
  %v1370 = vsel %vm1367, %v1369, %v1365
  %v1371 = vmul.f32 1.0, %v1370
  %1372 = vst [vmem:[%s8] sm:$0xff] %v1371
  // Predicated region
  $region34: #{discriminator_forward.1} parent=0 // pred_check
    _
  $region35: #{discriminator_forward.1} parent=0 // pred_check_branch
    %1374 = sbr.rel (0) target = $region37
  $region36: #{discriminator_forward.1} parent=0 // pred_region
    _
  $region37: #{discriminator_forward.1} parent=0 // pred_fallthru
    _
  // Predicated region
  $region38: #{discriminator_forward.1} parent=0 // pred_check
    _
  $region39: #{discriminator_forward.1} parent=0 // pred_check_branch
    %1376 = sbr.rel (0) target = $region41
  $region40: #{discriminator_forward.1} parent=0 // pred_region
    _
  $region41: #{discriminator_forward.1} parent=0 // pred_fallthru
    _

</llo_original>
